<compile_context>
chip_gen: v7x
topology: tpu7x:2x2x1
jax: 0.10.0
libtpu: 0.0.40
codegen_flags: <defaults>
</compile_context>

<pallas_src>
import functools

import jax
import jax.numpy as jnp
from jax import lax
from jax.experimental import pallas as pl
from jax.experimental.pallas import tpu as pltpu


def _round_up(x, m):
    return ((x + m - 1) // m) * m


def lstm_dqn_kernel(tok_ref, w_ref, b_ref, q_ref, *,
                    hidden_dim, batch, seq_len, vocab, action_space):
    """tok_ref: (T*B, 1) int32.  w_ref/b_ref: packed slabs.  q_ref: (T, A)."""
    H, B, T, V, A = hidden_dim, batch, seq_len, vocab, action_space
    G = 4 * H
    TB = T * B

    # ---- static lane offsets into the packed slabs (match prepare_params) ----
    off_hh = G
    off_w1 = 2 * G
    off_w2 = 2 * G + _round_up(H, 128)
    b1_off = _round_up(G, 128)
    b2_off = b1_off + _round_up(H, 128)

    emb_wih = w_ref[:, 0:G]                     # (V, 4H)  fused emb @ W_ih^T
    w_hh    = w_ref[:, off_hh:off_hh + G]       # (H, 4H)  W_hh^T
    w1      = w_ref[:, off_w1:off_w1 + H]       # (H, H)   DQN Linear 1 (pre-T)
    w2      = w_ref[:, off_w2:off_w2 + A]       # (H, A)   DQN Linear 2 (pre-T)
    b_g     = b_ref[:, 0:G]                     # (1, 4H)  b_ih + b_hh
    b1      = b_ref[:, b1_off:b1_off + H]       # (1, H)
    b2      = b_ref[:, b2_off:b2_off + A]       # (1, A)

    # ---- embedding gather fused with input projection: ONE MXU matmul ----
    tok = tok_ref[...]                                        # (TB, 1) int32
    lane_iota = lax.broadcasted_iota(jnp.int32, (TB, V), 1)
    onehot = (lane_iota == tok).astype(jnp.float32)           # (TB, V)
    # TODO(synk): out-of-range token ids give a zero one-hot row (zero
    #             embedding) instead of erroring like torch.nn.Embedding.
    xg = jnp.dot(onehot, emb_wih,
                 preferred_element_type=jnp.float32) + b_g    # (TB, 4H), vregs

    # ---- LSTM recurrence, statically unrolled; h/c carried as vreg values ----
    h = jnp.zeros((B, H), jnp.float32)
    c = jnp.zeros((B, H), jnp.float32)
    inv_b = 1.0 / float(B)
    mean_rows = []
    for t in range(T):
        gates = (xg[t * B:(t + 1) * B, :]
                 + jnp.dot(h, w_hh, preferred_element_type=jnp.float32))  # (B, 4H)
        sig = jax.nn.sigmoid(gates)       # one EUP pass on the full gates vreg
        tnh = jnp.tanh(gates)
        i_g = sig[:, 0 * H:1 * H]         # PyTorch gate order: i, f, g, o
        f_g = sig[:, 1 * H:2 * H]
        g_g = tnh[:, 2 * H:3 * H]
        o_g = sig[:, 3 * H:4 * H]
        c = f_g * c + i_g * g_g
        h = o_g * jnp.tanh(c)
        # batch mean (torch.mean(output, dim=1)) accumulated per step; off the
        # carried h/c dependency path, no VMEM scratch round-trip.
        mean_rows.append(jnp.sum(h, axis=0, keepdims=True) * inv_b)       # (1, H)

    state_rep = jnp.concatenate(mean_rows, axis=0)            # (T, H)

    # ---- DQN head: Linear(H -> H) + ReLU + Linear(H -> A) ----
    hid = jnp.maximum(
        jnp.dot(state_rep, w1, preferred_element_type=jnp.float32) + b1, 0.0)
    q_ref[...] = jnp.dot(hid, w2, preferred_element_type=jnp.float32) + b2


def init_params(key, emb_size, action_space, hidden_dim):
    H = hidden_dim
    ks = jax.random.split(key, 7)
    std = 1.0 / float(H) ** 0.5
    std_in = 1.0 / float(emb_size) ** 0.5
    return {
        # torch.nn.Embedding default init: N(0, 1)
        "emb": jax.random.normal(ks[0], (emb_size, H), jnp.float32),
        # torch.nn.LSTM default init: U(-1/sqrt(H), 1/sqrt(H))
        "w_ih": jax.random.uniform(ks[1], (4 * H, H), jnp.float32, -std, std),
        "w_hh": jax.random.uniform(ks[2], (4 * H, H), jnp.float32, -std, std),
        "b_ih": jax.random.uniform(ks[3], (4 * H,), jnp.float32, -std, std),
        "b_hh": jax.random.uniform(ks[4], (4 * H,), jnp.float32, -std, std),
        # DQN Linear weights are constant-initialized to 10000.0 in __init__
        "w1": jnp.full((H, emb_size), 10000.0, jnp.float32),
        "b1": jax.random.uniform(ks[5], (H,), jnp.float32, -std_in, std_in),
        "w2": jnp.full((action_space, H), 10000.0, jnp.float32),
        "b2": jax.random.uniform(ks[6], (action_space,), jnp.float32, -std, std),
    }


def prepare_params(params):
    """One-time host-side layout plumbing: fuse emb@W_ih^T, pack weight/bias slabs."""
    emb = params["emb"]
    V, H = emb.shape
    A = params["w2"].shape[0]
    assert V == H, "LSTM_DQN requires emb_size == hidden_dim"
    G = 4 * H

    emb_wih = emb @ params["w_ih"].T          # (V, 4H)  fused gather + input proj
    w_hh_t = params["w_hh"].T                 # (H, 4H)
    w1_t = params["w1"].T                     # (H, H)
    w2_t = params["w2"].T                     # (H, A)

    w1_pad = _round_up(H, 128)
    w2_pad = _round_up(A, 128)
    w_slab = jnp.zeros((H, 2 * G + w1_pad + w2_pad), jnp.float32)
    w_slab = w_slab.at[:, 0:G].set(emb_wih)
    w_slab = w_slab.at[:, G:2 * G].set(w_hh_t)
    w_slab = w_slab.at[:, 2 * G:2 * G + H].set(w1_t)
    w_slab = w_slab.at[:, 2 * G + w1_pad:2 * G + w1_pad + A].set(w2_t)

    b_pad = _round_up(G, 128)
    b1_pad = _round_up(H, 128)
    b2_pad = _round_up(A, 128)
    b_slab = jnp.zeros((1, b_pad + b1_pad + b2_pad), jnp.float32)
    b_slab = b_slab.at[:, 0:G].set((params["b_ih"] + params["b_hh"]).reshape(1, -1))
    b_slab = b_slab.at[:, b_pad:b_pad + H].set(params["b1"].reshape(1, -1))
    b_slab = b_slab.at[:, b_pad + b1_pad:b_pad + b1_pad + A].set(
        params["b2"].reshape(1, -1))

    return {"w_slab": w_slab, "b_slab": b_slab,
            "hidden_dim": H, "vocab": V, "action_space": A}


@functools.partial(jax.jit, static_argnames=("hidden_dim", "vocab", "action_space"))
def lstm_dqn_forward(tokens, w_slab, b_slab, *, hidden_dim, vocab, action_space):
    T, B = tokens.shape
    TB = T * B
    tok2d = tokens.reshape(TB, 1).astype(jnp.int32)

    kernel = functools.partial(lstm_dqn_kernel,
                               hidden_dim=hidden_dim, batch=B, seq_len=T,
                               vocab=vocab, action_space=action_space)
    vmem = pl.BlockSpec(memory_space=pltpu.MemorySpace.VMEM)
    # grid=() with fully-resident operands: total footprint (< 100 KB) is far
    # under VMEM on v5e/v6e (128 MiB) and v7x (64 MiB); no pipelining needed.
    return pl.pallas_call(
        kernel,
        out_shape=jax.ShapeDtypeStruct((T, action_space), jnp.float32),
        in_specs=[vmem, vmem, vmem],
        out_specs=vmem,
    )(tok2d, w_slab, b_slab)


def lstm_dqn_reference(tokens, params):
    """Pure-JAX reference mirroring the PyTorch forward (zero initial state)."""
    H = params["emb"].shape[1]
    x = params["emb"][tokens]                        # (T, B, H)
    B = x.shape[1]
    b = params["b_ih"] + params["b_hh"]

    def step(carry, x_t):
        h, c = carry
        gates = x_t @ params["w_ih"].T + h @ params["w_hh"].T + b
        i_g = jax.nn.sigmoid(gates[:, 0 * H:1 * H])
        f_g = jax.nn.sigmoid(gates[:, 1 * H:2 * H])
        g_g = jnp.tanh(gates[:, 2 * H:3 * H])
        o_g = jax.nn.sigmoid(gates[:, 3 * H:4 * H])
        c_new = f_g * c + i_g * g_g
        h_new = o_g * jnp.tanh(c_new)
        return (h_new, c_new), h_new

    h0 = jnp.zeros((B, H), jnp.float32)
    _, out = lax.scan(step, (h0, h0), x)             # (T, B, H)
    state_rep = jnp.mean(out, axis=1)                # (T, H)
    hid = jnp.maximum(state_rep @ params["w1"].T + params["b1"], 0.0)
    return hid @ params["w2"].T + params["b2"]       # (T, A)


if __name__ == "__main__":
    emb_size = 32        # vocab size; must equal hidden_dim for the DQN head
    hidden_dim = 32
    action_space = 4
    T, B = 8, 2

    key = jax.random.PRNGKey(0)
    k_param, k_tok = jax.random.split(key)
    params = init_params(k_param, emb_size, action_space, hidden_dim)
    kp = prepare_params(params)
    tokens = jax.random.randint(k_tok, (T, B), 0, emb_size, dtype=jnp.int32)

    q_vals = jax.block_until_ready(
        lstm_dqn_forward(tokens, kp["w_slab"], kp["b_slab"],
                         hidden_dim=kp["hidden_dim"], vocab=kp["vocab"],
                         action_space=kp["action_space"]))
    q_ref = jax.block_until_ready(lstm_dqn_reference(tokens, params))

    assert q_vals.shape == (T, action_space)
    err = jnp.max(jnp.abs(q_vals - q_ref) / (jnp.abs(q_ref) + 1.0))
    assert err < 1e-3, f"mismatch vs reference, rel err {err}"
    print("KERNEL_OK")
</pallas_src>

<mosaic_0001>
module attributes {stable_mosaic.version = 11 : i64} {
  func.func @lstm_dqn_kernel(%arg0: memref<16x1xi32, #tpu.memory_space<vmem>>, %arg1: memref<32x512xf32, #tpu.memory_space<vmem>>, %arg2: memref<1x384xf32, #tpu.memory_space<vmem>>, %arg3: memref<8x4xf32, #tpu.memory_space<vmem>>) attributes {dimension_semantics = [], scalar_prefetch = 0 : i64, scratch_operands = 0 : i64, tpu.core_type = #tpu.core_type<tc>} {
    %c0 = arith.constant 0 : index
    %c0_0 = arith.constant 0 : index
    %0 = vector.load %arg1[%c0, %c0_0] : memref<32x512xf32, #tpu.memory_space<vmem>>, vector<32x128xf32>
    %c0_1 = arith.constant 0 : index
    %c128 = arith.constant 128 : index
    %1 = vector.load %arg1[%c0_1, %c128] : memref<32x512xf32, #tpu.memory_space<vmem>>, vector<32x128xf32>
    %c0_2 = arith.constant 0 : index
    %c256 = arith.constant 256 : index
    %2 = vector.load %arg1[%c0_2, %c256] : memref<32x512xf32, #tpu.memory_space<vmem>>, vector<32x32xf32>
    %c0_3 = arith.constant 0 : index
    %c384 = arith.constant 384 : index
    %3 = vector.load %arg1[%c0_3, %c384] : memref<32x512xf32, #tpu.memory_space<vmem>>, vector<32x4xf32>
    %c0_4 = arith.constant 0 : index
    %c0_5 = arith.constant 0 : index
    %4 = vector.load %arg2[%c0_4, %c0_5] : memref<1x384xf32, #tpu.memory_space<vmem>>, vector<1x128xf32>
    %c0_6 = arith.constant 0 : index
    %c128_7 = arith.constant 128 : index
    %5 = vector.load %arg2[%c0_6, %c128_7] : memref<1x384xf32, #tpu.memory_space<vmem>>, vector<1x32xf32>
    %c0_8 = arith.constant 0 : index
    %c256_9 = arith.constant 256 : index
    %6 = vector.load %arg2[%c0_8, %c256_9] : memref<1x384xf32, #tpu.memory_space<vmem>>, vector<1x4xf32>
    %c0_10 = arith.constant 0 : index
    %c0_11 = arith.constant 0 : index
    %7 = vector.load %arg0[%c0_10, %c0_11] : memref<16x1xi32, #tpu.memory_space<vmem>>, vector<16x1xi32>
    %8 = tpu.iota {dimensions = array<i32: 1>} : vector<16x32xi32>
    %9 = vector.broadcast %7 : vector<16x1xi32> to vector<16x32xi32>
    %10 = arith.cmpi eq, %8, %9 : vector<16x32xi32>
    %11 = arith.extui %10 : vector<16x32xi1> to vector<16x32xi32>
    %12 = arith.sitofp %11 : vector<16x32xi32> to vector<16x32xf32>
    %cst = arith.constant dense<0.000000e+00> : vector<16x128xf32>
    %13 = tpu.matmul %12, %0, %cst {dimension_numbers = #tpu.dot_dimension_numbers<[1], [0], [0], [1], [0, 0, 1, 1], [], []>} : vector<16x32xf32>, vector<32x128xf32>, vector<16x128xf32> -> vector<16x128xf32>
    %14 = vector.broadcast %4 : vector<1x128xf32> to vector<16x128xf32>
    %15 = arith.addf %13, %14 : vector<16x128xf32>
    %cst_12 = arith.constant 0.000000e+00 : f32
    %16 = vector.broadcast %cst_12 : f32 to vector<2x32xf32>
    %cst_13 = arith.constant 0.000000e+00 : f32
    %17 = vector.broadcast %cst_13 : f32 to vector<2x32xf32>
    %18 = vector.extract_strided_slice %15 {offsets = [0, 0], sizes = [2, 128], strides = [1, 1]} : vector<16x128xf32> to vector<2x128xf32>
    %cst_14 = arith.constant dense<0.000000e+00> : vector<2x128xf32>
    %19 = tpu.matmul %16, %1, %cst_14 {dimension_numbers = #tpu.dot_dimension_numbers<[1], [0], [0], [1], [0, 0, 1, 1], [], []>} : vector<2x32xf32>, vector<32x128xf32>, vector<2x128xf32> -> vector<2x128xf32>
    %20 = arith.addf %18, %19 : vector<2x128xf32>
    %21 = arith.negf %20 : vector<2x128xf32>
    %22 = math.exp %21 : vector<2x128xf32>
    %cst_15 = arith.constant 1.000000e+00 : f32
    %23 = vector.broadcast %cst_15 : f32 to vector<2x128xf32>
    %24 = arith.addf %23, %22 : vector<2x128xf32>
    %25 = arith.divf %23, %24 : vector<2x128xf32>
    %26 = math.tanh %20 : vector<2x128xf32>
    %27 = vector.extract_strided_slice %25 {offsets = [0, 0], sizes = [2, 32], strides = [1, 1]} : vector<2x128xf32> to vector<2x32xf32>
    %28 = vector.extract_strided_slice %25 {offsets = [0, 32], sizes = [2, 32], strides = [1, 1]} : vector<2x128xf32> to vector<2x32xf32>
    %29 = vector.extract_strided_slice %26 {offsets = [0, 64], sizes = [2, 32], strides = [1, 1]} : vector<2x128xf32> to vector<2x32xf32>
    %30 = vector.extract_strided_slice %25 {offsets = [0, 96], sizes = [2, 32], strides = [1, 1]} : vector<2x128xf32> to vector<2x32xf32>
    %31 = arith.mulf %28, %17 : vector<2x32xf32>
    %32 = arith.mulf %27, %29 : vector<2x32xf32>
    %33 = arith.addf %31, %32 : vector<2x32xf32>
    %34 = math.tanh %33 : vector<2x32xf32>
    %35 = arith.mulf %30, %34 : vector<2x32xf32>
    %cst_16 = arith.constant dense<0.000000e+00> : vector<32xf32>
    %36 = vector.multi_reduction <add>, %35, %cst_16 [0] : vector<2x32xf32> to vector<32xf32>
    %37 = vector.shape_cast %36 : vector<32xf32> to vector<1x32xf32>
    %cst_17 = arith.constant 5.000000e-01 : f32
    %38 = vector.broadcast %cst_17 : f32 to vector<1x32xf32>
    %39 = arith.mulf %37, %38 : vector<1x32xf32>
    %40 = vector.extract_strided_slice %15 {offsets = [2, 0], sizes = [2, 128], strides = [1, 1]} : vector<16x128xf32> to vector<2x128xf32>
    %cst_18 = arith.constant dense<0.000000e+00> : vector<2x128xf32>
    %41 = tpu.matmul %35, %1, %cst_18 {dimension_numbers = #tpu.dot_dimension_numbers<[1], [0], [0], [1], [0, 0, 1, 1], [], []>} : vector<2x32xf32>, vector<32x128xf32>, vector<2x128xf32> -> vector<2x128xf32>
    %42 = arith.addf %40, %41 : vector<2x128xf32>
    %43 = arith.negf %42 : vector<2x128xf32>
    %44 = math.exp %43 : vector<2x128xf32>
    %cst_19 = arith.constant 1.000000e+00 : f32
    %45 = vector.broadcast %cst_19 : f32 to vector<2x128xf32>
    %46 = arith.addf %45, %44 : vector<2x128xf32>
    %47 = arith.divf %45, %46 : vector<2x128xf32>
    %48 = math.tanh %42 : vector<2x128xf32>
    %49 = vector.extract_strided_slice %47 {offsets = [0, 0], sizes = [2, 32], strides = [1, 1]} : vector<2x128xf32> to vector<2x32xf32>
    %50 = vector.extract_strided_slice %47 {offsets = [0, 32], sizes = [2, 32], strides = [1, 1]} : vector<2x128xf32> to vector<2x32xf32>
    %51 = vector.extract_strided_slice %48 {offsets = [0, 64], sizes = [2, 32], strides = [1, 1]} : vector<2x128xf32> to vector<2x32xf32>
    %52 = vector.extract_strided_slice %47 {offsets = [0, 96], sizes = [2, 32], strides = [1, 1]} : vector<2x128xf32> to vector<2x32xf32>
    %53 = arith.mulf %50, %33 : vector<2x32xf32>
    %54 = arith.mulf %49, %51 : vector<2x32xf32>
    %55 = arith.addf %53, %54 : vector<2x32xf32>
    %56 = math.tanh %55 : vector<2x32xf32>
    %57 = arith.mulf %52, %56 : vector<2x32xf32>
    %cst_20 = arith.constant dense<0.000000e+00> : vector<32xf32>
    %58 = vector.multi_reduction <add>, %57, %cst_20 [0] : vector<2x32xf32> to vector<32xf32>
    %59 = vector.shape_cast %58 : vector<32xf32> to vector<1x32xf32>
    %cst_21 = arith.constant 5.000000e-01 : f32
    %60 = vector.broadcast %cst_21 : f32 to vector<1x32xf32>
    %61 = arith.mulf %59, %60 : vector<1x32xf32>
    %62 = vector.extract_strided_slice %15 {offsets = [4, 0], sizes = [2, 128], strides = [1, 1]} : vector<16x128xf32> to vector<2x128xf32>
    %cst_22 = arith.constant dense<0.000000e+00> : vector<2x128xf32>
    %63 = tpu.matmul %57, %1, %cst_22 {dimension_numbers = #tpu.dot_dimension_numbers<[1], [0], [0], [1], [0, 0, 1, 1], [], []>} : vector<2x32xf32>, vector<32x128xf32>, vector<2x128xf32> -> vector<2x128xf32>
    %64 = arith.addf %62, %63 : vector<2x128xf32>
    %65 = arith.negf %64 : vector<2x128xf32>
    %66 = math.exp %65 : vector<2x128xf32>
    %cst_23 = arith.constant 1.000000e+00 : f32
    %67 = vector.broadcast %cst_23 : f32 to vector<2x128xf32>
    %68 = arith.addf %67, %66 : vector<2x128xf32>
    %69 = arith.divf %67, %68 : vector<2x128xf32>
    %70 = math.tanh %64 : vector<2x128xf32>
    %71 = vector.extract_strided_slice %69 {offsets = [0, 0], sizes = [2, 32], strides = [1, 1]} : vector<2x128xf32> to vector<2x32xf32>
    %72 = vector.extract_strided_slice %69 {offsets = [0, 32], sizes = [2, 32], strides = [1, 1]} : vector<2x128xf32> to vector<2x32xf32>
    %73 = vector.extract_strided_slice %70 {offsets = [0, 64], sizes = [2, 32], strides = [1, 1]} : vector<2x128xf32> to vector<2x32xf32>
    %74 = vector.extract_strided_slice %69 {offsets = [0, 96], sizes = [2, 32], strides = [1, 1]} : vector<2x128xf32> to vector<2x32xf32>
    %75 = arith.mulf %72, %55 : vector<2x32xf32>
    %76 = arith.mulf %71, %73 : vector<2x32xf32>
    %77 = arith.addf %75, %76 : vector<2x32xf32>
    %78 = math.tanh %77 : vector<2x32xf32>
    %79 = arith.mulf %74, %78 : vector<2x32xf32>
    %cst_24 = arith.constant dense<0.000000e+00> : vector<32xf32>
    %80 = vector.multi_reduction <add>, %79, %cst_24 [0] : vector<2x32xf32> to vector<32xf32>
    %81 = vector.shape_cast %80 : vector<32xf32> to vector<1x32xf32>
    %cst_25 = arith.constant 5.000000e-01 : f32
    %82 = vector.broadcast %cst_25 : f32 to vector<1x32xf32>
    %83 = arith.mulf %81, %82 : vector<1x32xf32>
    %84 = vector.extract_strided_slice %15 {offsets = [6, 0], sizes = [2, 128], strides = [1, 1]} : vector<16x128xf32> to vector<2x128xf32>
    %cst_26 = arith.constant dense<0.000000e+00> : vector<2x128xf32>
    %85 = tpu.matmul %79, %1, %cst_26 {dimension_numbers = #tpu.dot_dimension_numbers<[1], [0], [0], [1], [0, 0, 1, 1], [], []>} : vector<2x32xf32>, vector<32x128xf32>, vector<2x128xf32> -> vector<2x128xf32>
    %86 = arith.addf %84, %85 : vector<2x128xf32>
    %87 = arith.negf %86 : vector<2x128xf32>
    %88 = math.exp %87 : vector<2x128xf32>
    %cst_27 = arith.constant 1.000000e+00 : f32
    %89 = vector.broadcast %cst_27 : f32 to vector<2x128xf32>
    %90 = arith.addf %89, %88 : vector<2x128xf32>
    %91 = arith.divf %89, %90 : vector<2x128xf32>
    %92 = math.tanh %86 : vector<2x128xf32>
    %93 = vector.extract_strided_slice %91 {offsets = [0, 0], sizes = [2, 32], strides = [1, 1]} : vector<2x128xf32> to vector<2x32xf32>
    %94 = vector.extract_strided_slice %91 {offsets = [0, 32], sizes = [2, 32], strides = [1, 1]} : vector<2x128xf32> to vector<2x32xf32>
    %95 = vector.extract_strided_slice %92 {offsets = [0, 64], sizes = [2, 32], strides = [1, 1]} : vector<2x128xf32> to vector<2x32xf32>
    %96 = vector.extract_strided_slice %91 {offsets = [0, 96], sizes = [2, 32], strides = [1, 1]} : vector<2x128xf32> to vector<2x32xf32>
    %97 = arith.mulf %94, %77 : vector<2x32xf32>
    %98 = arith.mulf %93, %95 : vector<2x32xf32>
    %99 = arith.addf %97, %98 : vector<2x32xf32>
    %100 = math.tanh %99 : vector<2x32xf32>
    %101 = arith.mulf %96, %100 : vector<2x32xf32>
    %cst_28 = arith.constant dense<0.000000e+00> : vector<32xf32>
    %102 = vector.multi_reduction <add>, %101, %cst_28 [0] : vector<2x32xf32> to vector<32xf32>
    %103 = vector.shape_cast %102 : vector<32xf32> to vector<1x32xf32>
    %cst_29 = arith.constant 5.000000e-01 : f32
    %104 = vector.broadcast %cst_29 : f32 to vector<1x32xf32>
    %105 = arith.mulf %103, %104 : vector<1x32xf32>
    %106 = vector.extract_strided_slice %15 {offsets = [8, 0], sizes = [2, 128], strides = [1, 1]} : vector<16x128xf32> to vector<2x128xf32>
    %cst_30 = arith.constant dense<0.000000e+00> : vector<2x128xf32>
    %107 = tpu.matmul %101, %1, %cst_30 {dimension_numbers = #tpu.dot_dimension_numbers<[1], [0], [0], [1], [0, 0, 1, 1], [], []>} : vector<2x32xf32>, vector<32x128xf32>, vector<2x128xf32> -> vector<2x128xf32>
    %108 = arith.addf %106, %107 : vector<2x128xf32>
    %109 = arith.negf %108 : vector<2x128xf32>
    %110 = math.exp %109 : vector<2x128xf32>
    %cst_31 = arith.constant 1.000000e+00 : f32
    %111 = vector.broadcast %cst_31 : f32 to vector<2x128xf32>
    %112 = arith.addf %111, %110 : vector<2x128xf32>
    %113 = arith.divf %111, %112 : vector<2x128xf32>
    %114 = math.tanh %108 : vector<2x128xf32>
    %115 = vector.extract_strided_slice %113 {offsets = [0, 0], sizes = [2, 32], strides = [1, 1]} : vector<2x128xf32> to vector<2x32xf32>
    %116 = vector.extract_strided_slice %113 {offsets = [0, 32], sizes = [2, 32], strides = [1, 1]} : vector<2x128xf32> to vector<2x32xf32>
    %117 = vector.extract_strided_slice %114 {offsets = [0, 64], sizes = [2, 32], strides = [1, 1]} : vector<2x128xf32> to vector<2x32xf32>
    %118 = vector.extract_strided_slice %113 {offsets = [0, 96], sizes = [2, 32], strides = [1, 1]} : vector<2x128xf32> to vector<2x32xf32>
    %119 = arith.mulf %116, %99 : vector<2x32xf32>
    %120 = arith.mulf %115, %117 : vector<2x32xf32>
    %121 = arith.addf %119, %120 : vector<2x32xf32>
    %122 = math.tanh %121 : vector<2x32xf32>
    %123 = arith.mulf %118, %122 : vector<2x32xf32>
    %cst_32 = arith.constant dense<0.000000e+00> : vector<32xf32>
    %124 = vector.multi_reduction <add>, %123, %cst_32 [0] : vector<2x32xf32> to vector<32xf32>
    %125 = vector.shape_cast %124 : vector<32xf32> to vector<1x32xf32>
    %cst_33 = arith.constant 5.000000e-01 : f32
    %126 = vector.broadcast %cst_33 : f32 to vector<1x32xf32>
    %127 = arith.mulf %125, %126 : vector<1x32xf32>
    %128 = vector.extract_strided_slice %15 {offsets = [10, 0], sizes = [2, 128], strides = [1, 1]} : vector<16x128xf32> to vector<2x128xf32>
    %cst_34 = arith.constant dense<0.000000e+00> : vector<2x128xf32>
    %129 = tpu.matmul %123, %1, %cst_34 {dimension_numbers = #tpu.dot_dimension_numbers<[1], [0], [0], [1], [0, 0, 1, 1], [], []>} : vector<2x32xf32>, vector<32x128xf32>, vector<2x128xf32> -> vector<2x128xf32>
    %130 = arith.addf %128, %129 : vector<2x128xf32>
    %131 = arith.negf %130 : vector<2x128xf32>
    %132 = math.exp %131 : vector<2x128xf32>
    %cst_35 = arith.constant 1.000000e+00 : f32
    %133 = vector.broadcast %cst_35 : f32 to vector<2x128xf32>
    %134 = arith.addf %133, %132 : vector<2x128xf32>
    %135 = arith.divf %133, %134 : vector<2x128xf32>
    %136 = math.tanh %130 : vector<2x128xf32>
    %137 = vector.extract_strided_slice %135 {offsets = [0, 0], sizes = [2, 32], strides = [1, 1]} : vector<2x128xf32> to vector<2x32xf32>
    %138 = vector.extract_strided_slice %135 {offsets = [0, 32], sizes = [2, 32], strides = [1, 1]} : vector<2x128xf32> to vector<2x32xf32>
    %139 = vector.extract_strided_slice %136 {offsets = [0, 64], sizes = [2, 32], strides = [1, 1]} : vector<2x128xf32> to vector<2x32xf32>
    %140 = vector.extract_strided_slice %135 {offsets = [0, 96], sizes = [2, 32], strides = [1, 1]} : vector<2x128xf32> to vector<2x32xf32>
    %141 = arith.mulf %138, %121 : vector<2x32xf32>
    %142 = arith.mulf %137, %139 : vector<2x32xf32>
    %143 = arith.addf %141, %142 : vector<2x32xf32>
    %144 = math.tanh %143 : vector<2x32xf32>
    %145 = arith.mulf %140, %144 : vector<2x32xf32>
    %cst_36 = arith.constant dense<0.000000e+00> : vector<32xf32>
    %146 = vector.multi_reduction <add>, %145, %cst_36 [0] : vector<2x32xf32> to vector<32xf32>
    %147 = vector.shape_cast %146 : vector<32xf32> to vector<1x32xf32>
    %cst_37 = arith.constant 5.000000e-01 : f32
    %148 = vector.broadcast %cst_37 : f32 to vector<1x32xf32>
    %149 = arith.mulf %147, %148 : vector<1x32xf32>
    %150 = vector.extract_strided_slice %15 {offsets = [12, 0], sizes = [2, 128], strides = [1, 1]} : vector<16x128xf32> to vector<2x128xf32>
    %cst_38 = arith.constant dense<0.000000e+00> : vector<2x128xf32>
    %151 = tpu.matmul %145, %1, %cst_38 {dimension_numbers = #tpu.dot_dimension_numbers<[1], [0], [0], [1], [0, 0, 1, 1], [], []>} : vector<2x32xf32>, vector<32x128xf32>, vector<2x128xf32> -> vector<2x128xf32>
    %152 = arith.addf %150, %151 : vector<2x128xf32>
    %153 = arith.negf %152 : vector<2x128xf32>
    %154 = math.exp %153 : vector<2x128xf32>
    %cst_39 = arith.constant 1.000000e+00 : f32
    %155 = vector.broadcast %cst_39 : f32 to vector<2x128xf32>
    %156 = arith.addf %155, %154 : vector<2x128xf32>
    %157 = arith.divf %155, %156 : vector<2x128xf32>
    %158 = math.tanh %152 : vector<2x128xf32>
    %159 = vector.extract_strided_slice %157 {offsets = [0, 0], sizes = [2, 32], strides = [1, 1]} : vector<2x128xf32> to vector<2x32xf32>
    %160 = vector.extract_strided_slice %157 {offsets = [0, 32], sizes = [2, 32], strides = [1, 1]} : vector<2x128xf32> to vector<2x32xf32>
    %161 = vector.extract_strided_slice %158 {offsets = [0, 64], sizes = [2, 32], strides = [1, 1]} : vector<2x128xf32> to vector<2x32xf32>
    %162 = vector.extract_strided_slice %157 {offsets = [0, 96], sizes = [2, 32], strides = [1, 1]} : vector<2x128xf32> to vector<2x32xf32>
    %163 = arith.mulf %160, %143 : vector<2x32xf32>
    %164 = arith.mulf %159, %161 : vector<2x32xf32>
    %165 = arith.addf %163, %164 : vector<2x32xf32>
    %166 = math.tanh %165 : vector<2x32xf32>
    %167 = arith.mulf %162, %166 : vector<2x32xf32>
    %cst_40 = arith.constant dense<0.000000e+00> : vector<32xf32>
    %168 = vector.multi_reduction <add>, %167, %cst_40 [0] : vector<2x32xf32> to vector<32xf32>
    %169 = vector.shape_cast %168 : vector<32xf32> to vector<1x32xf32>
    %cst_41 = arith.constant 5.000000e-01 : f32
    %170 = vector.broadcast %cst_41 : f32 to vector<1x32xf32>
    %171 = arith.mulf %169, %170 : vector<1x32xf32>
    %172 = vector.extract_strided_slice %15 {offsets = [14, 0], sizes = [2, 128], strides = [1, 1]} : vector<16x128xf32> to vector<2x128xf32>
    %cst_42 = arith.constant dense<0.000000e+00> : vector<2x128xf32>
    %173 = tpu.matmul %167, %1, %cst_42 {dimension_numbers = #tpu.dot_dimension_numbers<[1], [0], [0], [1], [0, 0, 1, 1], [], []>} : vector<2x32xf32>, vector<32x128xf32>, vector<2x128xf32> -> vector<2x128xf32>
    %174 = arith.addf %172, %173 : vector<2x128xf32>
    %175 = arith.negf %174 : vector<2x128xf32>
    %176 = math.exp %175 : vector<2x128xf32>
    %cst_43 = arith.constant 1.000000e+00 : f32
    %177 = vector.broadcast %cst_43 : f32 to vector<2x128xf32>
    %178 = arith.addf %177, %176 : vector<2x128xf32>
    %179 = arith.divf %177, %178 : vector<2x128xf32>
    %180 = math.tanh %174 : vector<2x128xf32>
    %181 = vector.extract_strided_slice %179 {offsets = [0, 0], sizes = [2, 32], strides = [1, 1]} : vector<2x128xf32> to vector<2x32xf32>
    %182 = vector.extract_strided_slice %179 {offsets = [0, 32], sizes = [2, 32], strides = [1, 1]} : vector<2x128xf32> to vector<2x32xf32>
    %183 = vector.extract_strided_slice %180 {offsets = [0, 64], sizes = [2, 32], strides = [1, 1]} : vector<2x128xf32> to vector<2x32xf32>
    %184 = vector.extract_strided_slice %179 {offsets = [0, 96], sizes = [2, 32], strides = [1, 1]} : vector<2x128xf32> to vector<2x32xf32>
    %185 = arith.mulf %182, %165 : vector<2x32xf32>
    %186 = arith.mulf %181, %183 : vector<2x32xf32>
    %187 = arith.addf %185, %186 : vector<2x32xf32>
    %188 = math.tanh %187 : vector<2x32xf32>
    %189 = arith.mulf %184, %188 : vector<2x32xf32>
    %cst_44 = arith.constant dense<0.000000e+00> : vector<32xf32>
    %190 = vector.multi_reduction <add>, %189, %cst_44 [0] : vector<2x32xf32> to vector<32xf32>
    %191 = vector.shape_cast %190 : vector<32xf32> to vector<1x32xf32>
    %cst_45 = arith.constant 5.000000e-01 : f32
    %192 = vector.broadcast %cst_45 : f32 to vector<1x32xf32>
    %193 = arith.mulf %191, %192 : vector<1x32xf32>
    %194 = tpu.concatenate %39, %61, %83, %105, %127, %149, %171, %193 in 0 : vector<1x32xf32>, vector<1x32xf32>, vector<1x32xf32>, vector<1x32xf32>, vector<1x32xf32>, vector<1x32xf32>, vector<1x32xf32>, vector<1x32xf32> -> vector<8x32xf32>
    %cst_46 = arith.constant dense<0.000000e+00> : vector<8x32xf32>
    %195 = tpu.matmul %194, %2, %cst_46 {dimension_numbers = #tpu.dot_dimension_numbers<[1], [0], [0], [1], [0, 0, 1, 1], [], []>} : vector<8x32xf32>, vector<32x32xf32>, vector<8x32xf32> -> vector<8x32xf32>
    %196 = vector.broadcast %5 : vector<1x32xf32> to vector<8x32xf32>
    %197 = arith.addf %195, %196 : vector<8x32xf32>
    %cst_47 = arith.constant 0.000000e+00 : f32
    %198 = vector.broadcast %cst_47 : f32 to vector<8x32xf32>
    %199 = arith.maximumf %197, %198 : vector<8x32xf32>
    %cst_48 = arith.constant dense<0.000000e+00> : vector<8x4xf32>
    %200 = tpu.matmul %199, %3, %cst_48 {dimension_numbers = #tpu.dot_dimension_numbers<[1], [0], [0], [1], [0, 0, 1, 1], [], []>} : vector<8x32xf32>, vector<32x4xf32>, vector<8x4xf32> -> vector<8x4xf32>
    %201 = vector.broadcast %6 : vector<1x4xf32> to vector<8x4xf32>
    %202 = arith.addf %200, %201 : vector<8x4xf32>
    %c0_49 = arith.constant 0 : index
    %c0_50 = arith.constant 0 : index
    %203 = vector.load %arg3[%c0_49, %c0_50] : memref<8x4xf32, #tpu.memory_space<vmem>>, vector<8x4xf32>
    tpu.vector_store %arg3[%c0_49, %c0_50], %202 {strides = array<i32>} : memref<8x4xf32, #tpu.memory_space<vmem>>, vector<8x4xf32>,
    return
  }
}

</mosaic_0001>

<llo_original>
// kernel: lstm_dqn_forward.1
$region0: #{lstm_dqn_forward.1}
  #allocation0 [shape = 'u32[]', space=smem, size = 0x4, offset = 0x4, fixed_abs, tag = 'smem constant byte address 0x4 - core index']
  #allocation1 [shape = 'u32[144,128]{1,0:T(1,128)}', space=vmem, size = 0x12000, scoped, tag = 'internal scratch']
  %s0 = inlined_call_operand.vmem [shape: s32[16,1], index: 0, kind: input, shape index: {}]
  %s1 = inlined_call_operand.hbm [shape: f32[32,512], index: 1, kind: input, shape index: {}]
  %s2 = inlined_call_operand.vmem [shape: f32[1,384], index: 2, kind: input, shape index: {}]
  %s3 = inlined_call_operand.vmem [shape: f32[8,4], index: 3, kind: output, shape index: {}]
  %s4 = sld [smem:[#allocation0]]
  $region26: #{lstm_dqn_forward.1} parent=0
    _
  %s6 = ssub.s32 1, %s4
  %s7 = scalar_select 0, %s6, %s4
  $region1: #{lstm_dqn_forward.1} parent=0
    #allocation2 [shape = 'u8[65536]{0}', space=vmem, size = 0x10000, scoped, tag = 'input window, operand 1, single buffered']
    #allocation3 [shape = 's32[1]{0}', space=sflag, size = 0x4, scoped, tag = 'scoped memory for lstm_dqn_forward.1']
    %8 = vsyncpa [#allocation3], 0
    // Predicated region
    $region2: #{lstm_dqn_forward.1} parent=1 // pred_check
      _
    $region3: #{lstm_dqn_forward.1} parent=1 // pred_check_branch
      %10 = sbr.rel (0) target = $region5
    $region4: #{lstm_dqn_forward.1} parent=1 // pred_region
      _
    $region5: #{lstm_dqn_forward.1} parent=1 // pred_fallthru
      _
    // Predicated region
    $region6: #{lstm_dqn_forward.1} parent=1 // pred_check
      _
    $region7: #{lstm_dqn_forward.1} parent=1 // pred_check_branch
      %12 = sbr.rel (0) target = $region9
    $region8: #{lstm_dqn_forward.1} parent=1 // pred_region
      %s14 = ssub.s32 2048, 2048
      %15 = vsyncadd [#allocation3], %s14
      %s16 = sshll.u32 [#allocation2], 4
      %s17 = int_to_ptr.vmem [resolvable:$true] %s16
      %22 = dma.hbm_to_vmem [thread:$0]  %s1, 2048, %s17, [#allocation3], 512, 512, 32
    $region9: #{lstm_dqn_forward.1} parent=1 // pred_fallthru
      _
    // Predicated region
    $region10: #{lstm_dqn_forward.1} parent=1 // pred_check
      _
    $region11: #{lstm_dqn_forward.1} parent=1 // pred_check_branch
      %24 = sbr.rel (0) target = $region13
    $region12: #{lstm_dqn_forward.1} parent=1 // pred_region
      _
    $region13: #{lstm_dqn_forward.1} parent=1 // pred_fallthru
      _
    // Predicated region
    $region14: #{lstm_dqn_forward.1} parent=1 // pred_check
      _
    $region15: #{lstm_dqn_forward.1} parent=1 // pred_check_branch
      %26 = sbr.rel (0) target = $region17
    $region16: #{lstm_dqn_forward.1} parent=1 // pred_region
      %27 = dma.done [#allocation3], 2048
    $region17: #{lstm_dqn_forward.1} parent=1 // pred_fallthru
      _
    %v28 = vld [vmem:[#allocation2] sm:$0xff]
    %v29 = vld [vmem:[#allocation2 + $0x20] sm:$0xff]
    %v30 = vld [vmem:[#allocation2 + $0x40] sm:$0xff]
    %v31 = vld [vmem:[#allocation2 + $0x60] sm:$0xff]
    %v32 = vld [vmem:[#allocation2 + $0x8] sm:$0xff]
    %v33 = vld [vmem:[#allocation2 + $0x28] sm:$0xff]
    %v34 = vld [vmem:[#allocation2 + $0x48] sm:$0xff]
    %v35 = vld [vmem:[#allocation2 + $0x68] sm:$0xff]
    %v36 = vld [vmem:[#allocation2 + $0x10] sm:$0xff]
    %v37 = vld [vmem:[#allocation2 + $0x30] sm:$0xff]
    %v38 = vld [vmem:[#allocation2 + $0x50] sm:$0xff]
    %v39 = vld [vmem:[#allocation2 + $0x70] sm:$0xff]
    %v40 = vld [vmem:[#allocation2 + $0x18] sm:$0xff]
    %v41 = vld [vmem:[#allocation2 + $0x38] sm:$0xff]
    %v42 = vld [vmem:[#allocation2 + $0x58] sm:$0xff]
    %v43 = vld [vmem:[#allocation2 + $0x78] sm:$0xff]
    %v44 = vld [vmem:[%s2] sm:$0x1]
    %v45 = vld [vmem:[%s2 + $0x1] sm:$0x1]
    %v46 = vld [vmem:[%s2 + $0x2] sm:$0x1]
    %v47 = vld [vmem:[%s0] sm:$0xff]
    %v48 = vld [vmem:[%s0 + $0x8] sm:$0xff]
    %v49 = vlaneseq
    %v50 = vand.u32 %v49, 127
    %51 = vset.pattern.permute.xlu0 0
    %52 = vperm.xlu0 %51, %v47
    %v53 = vpop.permute.xlu0 %52
    %54 = vset.pattern.permute.xlu0 0
    %55 = vperm.xlu0 %54, %v48
    %v56 = vpop.permute.xlu0 %55
    %vm57 = vcmp.eq.s32.totalorder %v50, %v53
    %vm58 = vcmp.eq.s32.totalorder %v50, %v56
    %v59 = vsel %vm57, 1, 0
    %v60 = vsel %vm58, 1, 0
    %v61 = vcvt.s32.f32 %v59
    %v62 = vcvt.s32.f32 %v60
    %v64 = vlaneseq
    %v65 = vshrl.u32 %v64, 7
    %v66 = vsub.s32 0, %v65
    %v67 = vrot.slane %v44, %v66
    %vm69 = vcmask 261120
    %v71 = vsel %vm69, %v61, 0
    %v74 = vsel %vm69, %v62, 0
    %76 = vmatprep.subr.mxu0 0.0
    %77 = vmatpush1.msra.mxu0 %v28
    %78 = vmatprep.subr.mxu0 0.0
    %79 = vmatpush1.msra.mxu0 %v29
    %80 = vmatprep.subr.mxu0 0.0
    %81 = vmatpush1.msra.mxu0 %v30
    %82 = vmatprep.subr.mxu0 0.0
    %83 = vmatpush1.msra.mxu0 %v31
    %84 = vmatprep.subr.mxu0 0.0
    %85 = vmatpush1.msra.mxu0 0.0
    %86 = vmatprep.subr.mxu0 0.0
    %87 = vmatpush1.msra.mxu0 0.0
    %88 = vmatprep.subr.mxu0 0.0
    %89 = vmatpush1.msra.mxu0 0.0
    %90 = vmatprep.subr.mxu0 0.0
    %91 = vmatpush1.msra.mxu0 0.0
    %92 = vmatprep.subr.mxu0 0.0
    %93 = vmatpush1.msra.mxu0 0.0
    %94 = vmatprep.subr.mxu0 0.0
    %95 = vmatpush1.msra.mxu0 0.0
    %96 = vmatprep.subr.mxu0 0.0
    %97 = vmatpush1.msra.mxu0 0.0
    %98 = vmatprep.subr.mxu0 0.0
    %99 = vmatpush1.msra.mxu0 0.0
    %100 = vmatprep.subr.mxu0 0.0
    %101 = vmatpush1.msra.mxu0 0.0
    %102 = vmatprep.subr.mxu0 0.0
    %103 = vmatpush1.msra.mxu0 0.0
    %104 = vmatprep.subr.mxu0 0.0
    %105 = vmatpush1.msra.mxu0 0.0
    %106 = vmatprep.subr.mxu0 0.0
    %107 = vmatpush1.msra.mxu0 0.0
    %108 = vmatprep.subr.mxu0 0.0
    %109 = vmatpush1.msra.mxu0 0.0
    %110 = vmatprep.subr.mxu0 0.0
    %111 = vmatpush1.msra.mxu0 0.0
    %112 = vmatprep.subr.mxu0 0.0
    %113 = vmatpush1.msra.mxu0 0.0
    %114 = vmatprep.subr.mxu0 0.0
    %115 = vmatpush1.msra.mxu0 0.0
    %116 = vmatprep.subr.mxu0 0.0
    %117 = vmatpush1.msra.mxu0 0.0
    %118 = vmatprep.subr.mxu0 0.0
    %119 = vmatpush1.msra.mxu0 0.0
    %120 = vmatprep.subr.mxu0 0.0
    %121 = vmatpush1.msra.mxu0 0.0
    %122 = vmatprep.subr.mxu0 0.0
    %123 = vmatpush1.msra.mxu0 0.0
    %124 = vmatprep.subr.mxu0 0.0
    %125 = vmatpush1.msra.mxu0 0.0
    %126 = vmatprep.subr.mxu0 0.0
    %127 = vmatpush1.msra.mxu0 0.0
    %128 = vmatprep.subr.mxu0 0.0
    %129 = vmatpush1.msra.mxu0 0.0
    %130 = vmatprep.subr.mxu0 0.0
    %131 = vmatpush1.msra.mxu0 0.0
    %132 = vmatprep.subr.mxu0 0.0
    %133 = vmatpush1.msra.mxu0 0.0
    %134 = vmatprep.subr.mxu0 0.0
    %135 = vmatpush1.msra.mxu0 0.0
    %136 = vmatprep.subr.mxu0 0.0
    %137 = vmatpush1.msra.mxu0 0.0
    %138 = vmatprep.subr.mxu0 0.0
    %139 = vmatpush1.msra.mxu0 0.0
    %140 = vmatprep.mubr.f32.mxu0 0.0
    %141 = vmatmul.mubr.f32.gmra.mrb[0].mxu0 %v71
    %v142 = vpop.f32.mrb[0].mxu0
    %v143 = vadd.f32 %v67, %v142
    %v144 = vpop.f32.mrb[0].mxu0
    %145 = vmatprep.mubr.f32.mxu0 0.0
    %146 = vmatmul.mubr.f32.gmra.mrb[0].mxu0 %v74
    %v147 = vpop.f32.mrb[0].mxu0
    %v148 = vadd.f32 %v67, %v147
    %v149 = vpop.f32.mrb[0].mxu0
    %150 = vdwg.mxu0
    %v152 = vsel %vm69, 0.0, 0
    %154 = vmatprep.subr.mxu0 0.0
    %155 = vmatpush1.msra.mxu0 %v32
    %156 = vmatprep.subr.mxu0 0.0
    %157 = vmatpush1.msra.mxu0 %v33
    %158 = vmatprep.subr.mxu0 0.0
    %159 = vmatpush1.msra.mxu0 %v34
    %160 = vmatprep.subr.mxu0 0.0
    %161 = vmatpush1.msra.mxu0 %v35
    %162 = vmatprep.subr.mxu0 0.0
    %163 = vmatpush1.msra.mxu0 0.0
    %164 = vmatprep.subr.mxu0 0.0
    %165 = vmatpush1.msra.mxu0 0.0
    %166 = vmatprep.subr.mxu0 0.0
    %167 = vmatpush1.msra.mxu0 0.0
    %168 = vmatprep.subr.mxu0 0.0
    %169 = vmatpush1.msra.mxu0 0.0
    %170 = vmatprep.subr.mxu0 0.0
    %171 = vmatpush1.msra.mxu0 0.0
    %172 = vmatprep.subr.mxu0 0.0
    %173 = vmatpush1.msra.mxu0 0.0
    %174 = vmatprep.subr.mxu0 0.0
    %175 = vmatpush1.msra.mxu0 0.0
    %176 = vmatprep.subr.mxu0 0.0
    %177 = vmatpush1.msra.mxu0 0.0
    %178 = vmatprep.subr.mxu0 0.0
    %179 = vmatpush1.msra.mxu0 0.0
    %180 = vmatprep.subr.mxu0 0.0
    %181 = vmatpush1.msra.mxu0 0.0
    %182 = vmatprep.subr.mxu0 0.0
    %183 = vmatpush1.msra.mxu0 0.0
    %184 = vmatprep.subr.mxu0 0.0
    %185 = vmatpush1.msra.mxu0 0.0
    %186 = vmatprep.subr.mxu0 0.0
    %187 = vmatpush1.msra.mxu0 0.0
    %188 = vmatprep.subr.mxu0 0.0
    %189 = vmatpush1.msra.mxu0 0.0
    %190 = vmatprep.subr.mxu0 0.0
    %191 = vmatpush1.msra.mxu0 0.0
    %192 = vmatprep.subr.mxu0 0.0
    %193 = vmatpush1.msra.mxu0 0.0
    %194 = vmatprep.subr.mxu0 0.0
    %195 = vmatpush1.msra.mxu0 0.0
    %196 = vmatprep.subr.mxu0 0.0
    %197 = vmatpush1.msra.mxu0 0.0
    %198 = vmatprep.subr.mxu0 0.0
    %199 = vmatpush1.msra.mxu0 0.0
    %200 = vmatprep.subr.mxu0 0.0
    %201 = vmatpush1.msra.mxu0 0.0
    %202 = vmatprep.subr.mxu0 0.0
    %203 = vmatpush1.msra.mxu0 0.0
    %204 = vmatprep.subr.mxu0 0.0
    %205 = vmatpush1.msra.mxu0 0.0
    %206 = vmatprep.subr.mxu0 0.0
    %207 = vmatpush1.msra.mxu0 0.0
    %208 = vmatprep.subr.mxu0 0.0
    %209 = vmatpush1.msra.mxu0 0.0
    %210 = vmatprep.subr.mxu0 0.0
    %211 = vmatpush1.msra.mxu0 0.0
    %212 = vmatprep.subr.mxu0 0.0
    %213 = vmatpush1.msra.mxu0 0.0
    %214 = vmatprep.subr.mxu0 0.0
    %215 = vmatpush1.msra.mxu0 0.0
    %216 = vmatprep.subr.mxu0 0.0
    %217 = vmatpush1.msra.mxu0 0.0
    %218 = vmatprep.mubr.f32.mxu0 0.0
    %219 = vmatmul.mubr.f32.gmra.mrb[0].mxu0 %v152
    %v220 = vpop.f32.mrb[0].mxu0
    %v221 = vadd.f32 0.0, %v220
    %v222 = vpop.f32.mrb[0].mxu0
    %223 = vdwg.mxu0
    %v224 = vadd.f32 %v143, %v221
    %v225 = vxor.u32 %v224, 2147483648
    %v226 = vmul.f32 %v225, 1.442695
    %v227 = vpow.pop %v226
    %v228 = vadd.f32 %v227, 1.0
    %v229 = vrcp.pop %v228
    %v230 = vmul.f32 1.0, %v229
    %v231 = vtanh.pop %v224
    %v232 = vmul.f32 %v230, 0.0
    %234 = vrot.lane.b32.xlu0 %v231, 64
    %v235 = vpop.permute.xlu0 %234
    %v237 = vmul.f32 %v230, %v235
    %239 = vrot.lane.b32.xlu0 %v237, 32
    %v240 = vpop.permute.xlu0 %239
    %v242 = vadd.f32 %v232, %v240
    %v243 = vtanh.pop %v242
    %245 = vrot.lane.b32.xlu0 %v243, 64
    %v246 = vpop.permute.xlu0 %245
    %v248 = vmul.f32 %v230, %v246
    %vm249 = vcmask 1042176
    %v250 = vsel %vm249, %v248, 0.0
    %v251 = vrot.slane %v250, 4
    %v252 = vadd.f32 %v250, %v251
    %v253 = vrot.slane %v252, 2
    %v254 = vadd.f32 %v252, %v253
    %v255 = vrot.slane %v254, 1
    %v256 = vadd.f32 %v254, %v255
    %v257 = vmul.f32 %v256, 0.5
    %259 = vrot.lane.b32.xlu0 %v248, 32
    %v260 = vpop.permute.xlu0 %259
    %v261 = vsel %vm69, %v260, 0
    %263 = vmatprep.subr.mxu0 0.0
    %264 = vmatpush1.msra.mxu0 %v32
    %265 = vmatprep.subr.mxu0 0.0
    %266 = vmatpush1.msra.mxu0 %v33
    %267 = vmatprep.subr.mxu0 0.0
    %268 = vmatpush1.msra.mxu0 %v34
    %269 = vmatprep.subr.mxu0 0.0
    %270 = vmatpush1.msra.mxu0 %v35
    %271 = vmatprep.subr.mxu0 0.0
    %272 = vmatpush1.msra.mxu0 0.0
    %273 = vmatprep.subr.mxu0 0.0
    %274 = vmatpush1.msra.mxu0 0.0
    %275 = vmatprep.subr.mxu0 0.0
    %276 = vmatpush1.msra.mxu0 0.0
    %277 = vmatprep.subr.mxu0 0.0
    %278 = vmatpush1.msra.mxu0 0.0
    %279 = vmatprep.subr.mxu0 0.0
    %280 = vmatpush1.msra.mxu0 0.0
    %281 = vmatprep.subr.mxu0 0.0
    %282 = vmatpush1.msra.mxu0 0.0
    %283 = vmatprep.subr.mxu0 0.0
    %284 = vmatpush1.msra.mxu0 0.0
    %285 = vmatprep.subr.mxu0 0.0
    %286 = vmatpush1.msra.mxu0 0.0
    %287 = vmatprep.subr.mxu0 0.0
    %288 = vmatpush1.msra.mxu0 0.0
    %289 = vmatprep.subr.mxu0 0.0
    %290 = vmatpush1.msra.mxu0 0.0
    %291 = vmatprep.subr.mxu0 0.0
    %292 = vmatpush1.msra.mxu0 0.0
    %293 = vmatprep.subr.mxu0 0.0
    %294 = vmatpush1.msra.mxu0 0.0
    %295 = vmatprep.subr.mxu0 0.0
    %296 = vmatpush1.msra.mxu0 0.0
    %297 = vmatprep.subr.mxu0 0.0
    %298 = vmatpush1.msra.mxu0 0.0
    %299 = vmatprep.subr.mxu0 0.0
    %300 = vmatpush1.msra.mxu0 0.0
    %301 = vmatprep.subr.mxu0 0.0
    %302 = vmatpush1.msra.mxu0 0.0
    %303 = vmatprep.subr.mxu0 0.0
    %304 = vmatpush1.msra.mxu0 0.0
    %305 = vmatprep.subr.mxu0 0.0
    %306 = vmatpush1.msra.mxu0 0.0
    %307 = vmatprep.subr.mxu0 0.0
    %308 = vmatpush1.msra.mxu0 0.0
    %309 = vmatprep.subr.mxu0 0.0
    %310 = vmatpush1.msra.mxu0 0.0
    %311 = vmatprep.subr.mxu0 0.0
    %312 = vmatpush1.msra.mxu0 0.0
    %313 = vmatprep.subr.mxu0 0.0
    %314 = vmatpush1.msra.mxu0 0.0
    %315 = vmatprep.subr.mxu0 0.0
    %316 = vmatpush1.msra.mxu0 0.0
    %317 = vmatprep.subr.mxu0 0.0
    %318 = vmatpush1.msra.mxu0 0.0
    %319 = vmatprep.subr.mxu0 0.0
    %320 = vmatpush1.msra.mxu0 0.0
    %321 = vmatprep.subr.mxu0 0.0
    %322 = vmatpush1.msra.mxu0 0.0
    %323 = vmatprep.subr.mxu0 0.0
    %324 = vmatpush1.msra.mxu0 0.0
    %325 = vmatprep.subr.mxu0 0.0
    %326 = vmatpush1.msra.mxu0 0.0
    %327 = vmatprep.mubr.f32.mxu0 0.0
    %328 = vmatmul.mubr.f32.gmra.mrb[0].mxu0 %v261
    %v329 = vpop.f32.mrb[0].mxu0
    %v330 = vadd.f32 0.0, %v329
    %v331 = vpop.f32.mrb[0].mxu0
    %332 = vdwg.mxu0
    %v334 = vrot.slane %v330, 6
    %v336 = vadd.f32 %v143, %v334
    %v337 = vxor.u32 %v336, 2147483648
    %v338 = vmul.f32 %v337, 1.442695
    %v339 = vpow.pop %v338
    %v340 = vadd.f32 %v339, 1.0
    %v341 = vrcp.pop %v340
    %v342 = vmul.f32 1.0, %v341
    %v343 = vtanh.pop %v336
    %v345 = vrot.slane %v242, 6
    %v347 = vmul.f32 %v342, %v345
    %349 = vrot.lane.b32.xlu0 %v343, 64
    %v350 = vpop.permute.xlu0 %349
    %v352 = vmul.f32 %v342, %v350
    %354 = vrot.lane.b32.xlu0 %v352, 32
    %v355 = vpop.permute.xlu0 %354
    %v357 = vadd.f32 %v347, %v355
    %v358 = vtanh.pop %v357
    %360 = vrot.lane.b32.xlu0 %v358, 64
    %v361 = vpop.permute.xlu0 %360
    %v363 = vmul.f32 %v342, %v361
    %v365 = vrot.slane %v363, 2
    %v367 = vsel %vm249, %v365, 0.0
    %v368 = vrot.slane %v367, 4
    %v369 = vadd.f32 %v367, %v368
    %v370 = vrot.slane %v369, 2
    %v371 = vadd.f32 %v369, %v370
    %v372 = vrot.slane %v371, 1
    %v373 = vadd.f32 %v371, %v372
    %v374 = vmul.f32 %v373, 0.5
    %375 = vrot.lane.b32.xlu0 %v365, 32
    %v376 = vpop.permute.xlu0 %375
    %v377 = vsel %vm69, %v376, 0
    %379 = vmatprep.subr.mxu0 0.0
    %380 = vmatpush1.msra.mxu0 %v32
    %381 = vmatprep.subr.mxu0 0.0
    %382 = vmatpush1.msra.mxu0 %v33
    %383 = vmatprep.subr.mxu0 0.0
    %384 = vmatpush1.msra.mxu0 %v34
    %385 = vmatprep.subr.mxu0 0.0
    %386 = vmatpush1.msra.mxu0 %v35
    %387 = vmatprep.subr.mxu0 0.0
    %388 = vmatpush1.msra.mxu0 0.0
    %389 = vmatprep.subr.mxu0 0.0
    %390 = vmatpush1.msra.mxu0 0.0
    %391 = vmatprep.subr.mxu0 0.0
    %392 = vmatpush1.msra.mxu0 0.0
    %393 = vmatprep.subr.mxu0 0.0
    %394 = vmatpush1.msra.mxu0 0.0
    %395 = vmatprep.subr.mxu0 0.0
    %396 = vmatpush1.msra.mxu0 0.0
    %397 = vmatprep.subr.mxu0 0.0
    %398 = vmatpush1.msra.mxu0 0.0
    %399 = vmatprep.subr.mxu0 0.0
    %400 = vmatpush1.msra.mxu0 0.0
    %401 = vmatprep.subr.mxu0 0.0
    %402 = vmatpush1.msra.mxu0 0.0
    %403 = vmatprep.subr.mxu0 0.0
    %404 = vmatpush1.msra.mxu0 0.0
    %405 = vmatprep.subr.mxu0 0.0
    %406 = vmatpush1.msra.mxu0 0.0
    %407 = vmatprep.subr.mxu0 0.0
    %408 = vmatpush1.msra.mxu0 0.0
    %409 = vmatprep.subr.mxu0 0.0
    %410 = vmatpush1.msra.mxu0 0.0
    %411 = vmatprep.subr.mxu0 0.0
    %412 = vmatpush1.msra.mxu0 0.0
    %413 = vmatprep.subr.mxu0 0.0
    %414 = vmatpush1.msra.mxu0 0.0
    %415 = vmatprep.subr.mxu0 0.0
    %416 = vmatpush1.msra.mxu0 0.0
    %417 = vmatprep.subr.mxu0 0.0
    %418 = vmatpush1.msra.mxu0 0.0
    %419 = vmatprep.subr.mxu0 0.0
    %420 = vmatpush1.msra.mxu0 0.0
    %421 = vmatprep.subr.mxu0 0.0
    %422 = vmatpush1.msra.mxu0 0.0
    %423 = vmatprep.subr.mxu0 0.0
    %424 = vmatpush1.msra.mxu0 0.0
    %425 = vmatprep.subr.mxu0 0.0
    %426 = vmatpush1.msra.mxu0 0.0
    %427 = vmatprep.subr.mxu0 0.0
    %428 = vmatpush1.msra.mxu0 0.0
    %429 = vmatprep.subr.mxu0 0.0
    %430 = vmatpush1.msra.mxu0 0.0
    %431 = vmatprep.subr.mxu0 0.0
    %432 = vmatpush1.msra.mxu0 0.0
    %433 = vmatprep.subr.mxu0 0.0
    %434 = vmatpush1.msra.mxu0 0.0
    %435 = vmatprep.subr.mxu0 0.0
    %436 = vmatpush1.msra.mxu0 0.0
    %437 = vmatprep.subr.mxu0 0.0
    %438 = vmatpush1.msra.mxu0 0.0
    %439 = vmatprep.subr.mxu0 0.0
    %440 = vmatpush1.msra.mxu0 0.0
    %441 = vmatprep.subr.mxu0 0.0
    %442 = vmatpush1.msra.mxu0 0.0
    %443 = vmatprep.mubr.f32.mxu0 0.0
    %444 = vmatmul.mubr.f32.gmra.mrb[0].mxu0 %v377
    %v445 = vpop.f32.mrb[0].mxu0
    %v446 = vadd.f32 0.0, %v445
    %v447 = vpop.f32.mrb[0].mxu0
    %448 = vdwg.mxu0
    %v450 = vrot.slane %v446, 4
    %v452 = vadd.f32 %v143, %v450
    %v453 = vxor.u32 %v452, 2147483648
    %v454 = vmul.f32 %v453, 1.442695
    %v455 = vpow.pop %v454
    %v456 = vadd.f32 %v455, 1.0
    %v457 = vrcp.pop %v456
    %v458 = vmul.f32 1.0, %v457
    %v459 = vtanh.pop %v452
    %v461 = vrot.slane %v357, 6
    %v463 = vmul.f32 %v458, %v461
    %465 = vrot.lane.b32.xlu0 %v459, 64
    %v466 = vpop.permute.xlu0 %465
    %v468 = vmul.f32 %v458, %v466
    %470 = vrot.lane.b32.xlu0 %v468, 32
    %v471 = vpop.permute.xlu0 %470
    %v473 = vadd.f32 %v463, %v471
    %v474 = vtanh.pop %v473
    %476 = vrot.lane.b32.xlu0 %v474, 64
    %v477 = vpop.permute.xlu0 %476
    %v479 = vmul.f32 %v458, %v477
    %v481 = vrot.slane %v479, 4
    %v483 = vsel %vm249, %v481, 0.0
    %v484 = vrot.slane %v483, 4
    %v485 = vadd.f32 %v483, %v484
    %v486 = vrot.slane %v485, 2
    %v487 = vadd.f32 %v485, %v486
    %v488 = vrot.slane %v487, 1
    %v489 = vadd.f32 %v487, %v488
    %v490 = vmul.f32 %v489, 0.5
    %491 = vrot.lane.b32.xlu0 %v481, 32
    %v492 = vpop.permute.xlu0 %491
    %v493 = vsel %vm69, %v492, 0
    %495 = vmatprep.subr.mxu0 0.0
    %496 = vmatpush1.msra.mxu0 %v32
    %497 = vmatprep.subr.mxu0 0.0
    %498 = vmatpush1.msra.mxu0 %v33
    %499 = vmatprep.subr.mxu0 0.0
    %500 = vmatpush1.msra.mxu0 %v34
    %501 = vmatprep.subr.mxu0 0.0
    %502 = vmatpush1.msra.mxu0 %v35
    %503 = vmatprep.subr.mxu0 0.0
    %504 = vmatpush1.msra.mxu0 0.0
    %505 = vmatprep.subr.mxu0 0.0
    %506 = vmatpush1.msra.mxu0 0.0
    %507 = vmatprep.subr.mxu0 0.0
    %508 = vmatpush1.msra.mxu0 0.0
    %509 = vmatprep.subr.mxu0 0.0
    %510 = vmatpush1.msra.mxu0 0.0
    %511 = vmatprep.subr.mxu0 0.0
    %512 = vmatpush1.msra.mxu0 0.0
    %513 = vmatprep.subr.mxu0 0.0
    %514 = vmatpush1.msra.mxu0 0.0
    %515 = vmatprep.subr.mxu0 0.0
    %516 = vmatpush1.msra.mxu0 0.0
    %517 = vmatprep.subr.mxu0 0.0
    %518 = vmatpush1.msra.mxu0 0.0
    %519 = vmatprep.subr.mxu0 0.0
    %520 = vmatpush1.msra.mxu0 0.0
    %521 = vmatprep.subr.mxu0 0.0
    %522 = vmatpush1.msra.mxu0 0.0
    %523 = vmatprep.subr.mxu0 0.0
    %524 = vmatpush1.msra.mxu0 0.0
    %525 = vmatprep.subr.mxu0 0.0
    %526 = vmatpush1.msra.mxu0 0.0
    %527 = vmatprep.subr.mxu0 0.0
    %528 = vmatpush1.msra.mxu0 0.0
    %529 = vmatprep.subr.mxu0 0.0
    %530 = vmatpush1.msra.mxu0 0.0
    %531 = vmatprep.subr.mxu0 0.0
    %532 = vmatpush1.msra.mxu0 0.0
    %533 = vmatprep.subr.mxu0 0.0
    %534 = vmatpush1.msra.mxu0 0.0
    %535 = vmatprep.subr.mxu0 0.0
    %536 = vmatpush1.msra.mxu0 0.0
    %537 = vmatprep.subr.mxu0 0.0
    %538 = vmatpush1.msra.mxu0 0.0
    %539 = vmatprep.subr.mxu0 0.0
    %540 = vmatpush1.msra.mxu0 0.0
    %541 = vmatprep.subr.mxu0 0.0
    %542 = vmatpush1.msra.mxu0 0.0
    %543 = vmatprep.subr.mxu0 0.0
    %544 = vmatpush1.msra.mxu0 0.0
    %545 = vmatprep.subr.mxu0 0.0
    %546 = vmatpush1.msra.mxu0 0.0
    %547 = vmatprep.subr.mxu0 0.0
    %548 = vmatpush1.msra.mxu0 0.0
    %549 = vmatprep.subr.mxu0 0.0
    %550 = vmatpush1.msra.mxu0 0.0
    %551 = vmatprep.subr.mxu0 0.0
    %552 = vmatpush1.msra.mxu0 0.0
    %553 = vmatprep.subr.mxu0 0.0
    %554 = vmatpush1.msra.mxu0 0.0
    %555 = vmatprep.subr.mxu0 0.0
    %556 = vmatpush1.msra.mxu0 0.0
    %557 = vmatprep.subr.mxu0 0.0
    %558 = vmatpush1.msra.mxu0 0.0
    %559 = vmatprep.mubr.f32.mxu0 0.0
    %560 = vmatmul.mubr.f32.gmra.mrb[0].mxu0 %v493
    %v561 = vpop.f32.mrb[0].mxu0
    %v562 = vadd.f32 0.0, %v561
    %v563 = vpop.f32.mrb[0].mxu0
    %564 = vdwg.mxu0
    %v566 = vrot.slane %v562, 2
    %v568 = vadd.f32 %v143, %v566
    %v569 = vxor.u32 %v568, 2147483648
    %v570 = vmul.f32 %v569, 1.442695
    %v571 = vpow.pop %v570
    %v572 = vadd.f32 %v571, 1.0
    %v573 = vrcp.pop %v572
    %v574 = vmul.f32 1.0, %v573
    %v575 = vtanh.pop %v568
    %v577 = vrot.slane %v473, 6
    %v579 = vmul.f32 %v574, %v577
    %581 = vrot.lane.b32.xlu0 %v575, 64
    %v582 = vpop.permute.xlu0 %581
    %v584 = vmul.f32 %v574, %v582
    %586 = vrot.lane.b32.xlu0 %v584, 32
    %v587 = vpop.permute.xlu0 %586
    %v589 = vadd.f32 %v579, %v587
    %v590 = vtanh.pop %v589
    %592 = vrot.lane.b32.xlu0 %v590, 64
    %v593 = vpop.permute.xlu0 %592
    %v595 = vmul.f32 %v574, %v593
    %v597 = vrot.slane %v595, 6
    %v599 = vsel %vm249, %v597, 0.0
    %v600 = vrot.slane %v599, 4
    %v601 = vadd.f32 %v599, %v600
    %v602 = vrot.slane %v601, 2
    %v603 = vadd.f32 %v601, %v602
    %v604 = vrot.slane %v603, 1
    %v605 = vadd.f32 %v603, %v604
    %v606 = vmul.f32 %v605, 0.5
    %607 = vrot.lane.b32.xlu0 %v597, 32
    %v608 = vpop.permute.xlu0 %607
    %v609 = vsel %vm69, %v608, 0
    %611 = vmatprep.subr.mxu0 0.0
    %612 = vmatpush1.msra.mxu0 %v32
    %613 = vmatprep.subr.mxu0 0.0
    %614 = vmatpush1.msra.mxu0 %v33
    %615 = vmatprep.subr.mxu0 0.0
    %616 = vmatpush1.msra.mxu0 %v34
    %617 = vmatprep.subr.mxu0 0.0
    %618 = vmatpush1.msra.mxu0 %v35
    %619 = vmatprep.subr.mxu0 0.0
    %620 = vmatpush1.msra.mxu0 0.0
    %621 = vmatprep.subr.mxu0 0.0
    %622 = vmatpush1.msra.mxu0 0.0
    %623 = vmatprep.subr.mxu0 0.0
    %624 = vmatpush1.msra.mxu0 0.0
    %625 = vmatprep.subr.mxu0 0.0
    %626 = vmatpush1.msra.mxu0 0.0
    %627 = vmatprep.subr.mxu0 0.0
    %628 = vmatpush1.msra.mxu0 0.0
    %629 = vmatprep.subr.mxu0 0.0
    %630 = vmatpush1.msra.mxu0 0.0
    %631 = vmatprep.subr.mxu0 0.0
    %632 = vmatpush1.msra.mxu0 0.0
    %633 = vmatprep.subr.mxu0 0.0
    %634 = vmatpush1.msra.mxu0 0.0
    %635 = vmatprep.subr.mxu0 0.0
    %636 = vmatpush1.msra.mxu0 0.0
    %637 = vmatprep.subr.mxu0 0.0
    %638 = vmatpush1.msra.mxu0 0.0
    %639 = vmatprep.subr.mxu0 0.0
    %640 = vmatpush1.msra.mxu0 0.0
    %641 = vmatprep.subr.mxu0 0.0
    %642 = vmatpush1.msra.mxu0 0.0
    %643 = vmatprep.subr.mxu0 0.0
    %644 = vmatpush1.msra.mxu0 0.0
    %645 = vmatprep.subr.mxu0 0.0
    %646 = vmatpush1.msra.mxu0 0.0
    %647 = vmatprep.subr.mxu0 0.0
    %648 = vmatpush1.msra.mxu0 0.0
    %649 = vmatprep.subr.mxu0 0.0
    %650 = vmatpush1.msra.mxu0 0.0
    %651 = vmatprep.subr.mxu0 0.0
    %652 = vmatpush1.msra.mxu0 0.0
    %653 = vmatprep.subr.mxu0 0.0
    %654 = vmatpush1.msra.mxu0 0.0
    %655 = vmatprep.subr.mxu0 0.0
    %656 = vmatpush1.msra.mxu0 0.0
    %657 = vmatprep.subr.mxu0 0.0
    %658 = vmatpush1.msra.mxu0 0.0
    %659 = vmatprep.subr.mxu0 0.0
    %660 = vmatpush1.msra.mxu0 0.0
    %661 = vmatprep.subr.mxu0 0.0
    %662 = vmatpush1.msra.mxu0 0.0
    %663 = vmatprep.subr.mxu0 0.0
    %664 = vmatpush1.msra.mxu0 0.0
    %665 = vmatprep.subr.mxu0 0.0
    %666 = vmatpush1.msra.mxu0 0.0
    %667 = vmatprep.subr.mxu0 0.0
    %668 = vmatpush1.msra.mxu0 0.0
    %669 = vmatprep.subr.mxu0 0.0
    %670 = vmatpush1.msra.mxu0 0.0
    %671 = vmatprep.subr.mxu0 0.0
    %672 = vmatpush1.msra.mxu0 0.0
    %673 = vmatprep.subr.mxu0 0.0
    %674 = vmatpush1.msra.mxu0 0.0
    %675 = vmatprep.mubr.f32.mxu0 0.0
    %676 = vmatmul.mubr.f32.gmra.mrb[0].mxu0 %v609
    %v677 = vpop.f32.mrb[0].mxu0
    %v678 = vadd.f32 0.0, %v677
    %v679 = vpop.f32.mrb[0].mxu0
    %680 = vdwg.mxu0
    %v681 = vadd.f32 %v148, %v678
    %v682 = vxor.u32 %v681, 2147483648
    %v683 = vmul.f32 %v682, 1.442695
    %v684 = vpow.pop %v683
    %v685 = vadd.f32 %v684, 1.0
    %v686 = vrcp.pop %v685
    %v687 = vmul.f32 1.0, %v686
    %v688 = vtanh.pop %v681
    %v690 = vrot.slane %v589, 6
    %v692 = vmul.f32 %v687, %v690
    %694 = vrot.lane.b32.xlu0 %v688, 64
    %v695 = vpop.permute.xlu0 %694
    %v697 = vmul.f32 %v687, %v695
    %699 = vrot.lane.b32.xlu0 %v697, 32
    %v700 = vpop.permute.xlu0 %699
    %v702 = vadd.f32 %v692, %v700
    %v703 = vtanh.pop %v702
    %705 = vrot.lane.b32.xlu0 %v703, 64
    %v706 = vpop.permute.xlu0 %705
    %v708 = vmul.f32 %v687, %v706
    %v709 = vsel %vm249, %v708, 0.0
    %v710 = vrot.slane %v709, 4
    %v711 = vadd.f32 %v709, %v710
    %v712 = vrot.slane %v711, 2
    %v713 = vadd.f32 %v711, %v712
    %v714 = vrot.slane %v713, 1
    %v715 = vadd.f32 %v713, %v714
    %v716 = vmul.f32 %v715, 0.5
    %718 = vrot.lane.b32.xlu0 %v708, 32
    %v719 = vpop.permute.xlu0 %718
    %v720 = vsel %vm69, %v719, 0
    %722 = vmatprep.subr.mxu0 0.0
    %723 = vmatpush1.msra.mxu0 %v32
    %724 = vmatprep.subr.mxu0 0.0
    %725 = vmatpush1.msra.mxu0 %v33
    %726 = vmatprep.subr.mxu0 0.0
    %727 = vmatpush1.msra.mxu0 %v34
    %728 = vmatprep.subr.mxu0 0.0
    %729 = vmatpush1.msra.mxu0 %v35
    %730 = vmatprep.subr.mxu0 0.0
    %731 = vmatpush1.msra.mxu0 0.0
    %732 = vmatprep.subr.mxu0 0.0
    %733 = vmatpush1.msra.mxu0 0.0
    %734 = vmatprep.subr.mxu0 0.0
    %735 = vmatpush1.msra.mxu0 0.0
    %736 = vmatprep.subr.mxu0 0.0
    %737 = vmatpush1.msra.mxu0 0.0
    %738 = vmatprep.subr.mxu0 0.0
    %739 = vmatpush1.msra.mxu0 0.0
    %740 = vmatprep.subr.mxu0 0.0
    %741 = vmatpush1.msra.mxu0 0.0
    %742 = vmatprep.subr.mxu0 0.0
    %743 = vmatpush1.msra.mxu0 0.0
    %744 = vmatprep.subr.mxu0 0.0
    %745 = vmatpush1.msra.mxu0 0.0
    %746 = vmatprep.subr.mxu0 0.0
    %747 = vmatpush1.msra.mxu0 0.0
    %748 = vmatprep.subr.mxu0 0.0
    %749 = vmatpush1.msra.mxu0 0.0
    %750 = vmatprep.subr.mxu0 0.0
    %751 = vmatpush1.msra.mxu0 0.0
    %752 = vmatprep.subr.mxu0 0.0
    %753 = vmatpush1.msra.mxu0 0.0
    %754 = vmatprep.subr.mxu0 0.0
    %755 = vmatpush1.msra.mxu0 0.0
    %756 = vmatprep.subr.mxu0 0.0
    %757 = vmatpush1.msra.mxu0 0.0
    %758 = vmatprep.subr.mxu0 0.0
    %759 = vmatpush1.msra.mxu0 0.0
    %760 = vmatprep.subr.mxu0 0.0
    %761 = vmatpush1.msra.mxu0 0.0
    %762 = vmatprep.subr.mxu0 0.0
    %763 = vmatpush1.msra.mxu0 0.0
    %764 = vmatprep.subr.mxu0 0.0
    %765 = vmatpush1.msra.mxu0 0.0
    %766 = vmatprep.subr.mxu0 0.0
    %767 = vmatpush1.msra.mxu0 0.0
    %768 = vmatprep.subr.mxu0 0.0
    %769 = vmatpush1.msra.mxu0 0.0
    %770 = vmatprep.subr.mxu0 0.0
    %771 = vmatpush1.msra.mxu0 0.0
    %772 = vmatprep.subr.mxu0 0.0
    %773 = vmatpush1.msra.mxu0 0.0
    %774 = vmatprep.subr.mxu0 0.0
    %775 = vmatpush1.msra.mxu0 0.0
    %776 = vmatprep.subr.mxu0 0.0
    %777 = vmatpush1.msra.mxu0 0.0
    %778 = vmatprep.subr.mxu0 0.0
    %779 = vmatpush1.msra.mxu0 0.0
    %780 = vmatprep.subr.mxu0 0.0
    %781 = vmatpush1.msra.mxu0 0.0
    %782 = vmatprep.subr.mxu0 0.0
    %783 = vmatpush1.msra.mxu0 0.0
    %784 = vmatprep.subr.mxu0 0.0
    %785 = vmatpush1.msra.mxu0 0.0
    %786 = vmatprep.mubr.f32.mxu0 0.0
    %787 = vmatmul.mubr.f32.gmra.mrb[0].mxu0 %v720
    %v788 = vpop.f32.mrb[0].mxu0
    %v789 = vadd.f32 0.0, %v788
    %v790 = vpop.f32.mrb[0].mxu0
    %791 = vdwg.mxu0
    %v793 = vrot.slane %v789, 6
    %v795 = vadd.f32 %v148, %v793
    %v796 = vxor.u32 %v795, 2147483648
    %v797 = vmul.f32 %v796, 1.442695
    %v798 = vpow.pop %v797
    %v799 = vadd.f32 %v798, 1.0
    %v800 = vrcp.pop %v799
    %v801 = vmul.f32 1.0, %v800
    %v802 = vtanh.pop %v795
    %v804 = vrot.slane %v702, 6
    %v806 = vmul.f32 %v801, %v804
    %808 = vrot.lane.b32.xlu0 %v802, 64
    %v809 = vpop.permute.xlu0 %808
    %v811 = vmul.f32 %v801, %v809
    %813 = vrot.lane.b32.xlu0 %v811, 32
    %v814 = vpop.permute.xlu0 %813
    %v816 = vadd.f32 %v806, %v814
    %v817 = vtanh.pop %v816
    %819 = vrot.lane.b32.xlu0 %v817, 64
    %v820 = vpop.permute.xlu0 %819
    %v822 = vmul.f32 %v801, %v820
    %v824 = vrot.slane %v822, 2
    %v826 = vsel %vm249, %v824, 0.0
    %v827 = vrot.slane %v826, 4
    %v828 = vadd.f32 %v826, %v827
    %v829 = vrot.slane %v828, 2
    %v830 = vadd.f32 %v828, %v829
    %v831 = vrot.slane %v830, 1
    %v832 = vadd.f32 %v830, %v831
    %v833 = vmul.f32 %v832, 0.5
    %834 = vrot.lane.b32.xlu0 %v824, 32
    %v835 = vpop.permute.xlu0 %834
    %v836 = vsel %vm69, %v835, 0
    %838 = vmatprep.subr.mxu0 0.0
    %839 = vmatpush1.msra.mxu0 %v32
    %840 = vmatprep.subr.mxu0 0.0
    %841 = vmatpush1.msra.mxu0 %v33
    %842 = vmatprep.subr.mxu0 0.0
    %843 = vmatpush1.msra.mxu0 %v34
    %844 = vmatprep.subr.mxu0 0.0
    %845 = vmatpush1.msra.mxu0 %v35
    %846 = vmatprep.subr.mxu0 0.0
    %847 = vmatpush1.msra.mxu0 0.0
    %848 = vmatprep.subr.mxu0 0.0
    %849 = vmatpush1.msra.mxu0 0.0
    %850 = vmatprep.subr.mxu0 0.0
    %851 = vmatpush1.msra.mxu0 0.0
    %852 = vmatprep.subr.mxu0 0.0
    %853 = vmatpush1.msra.mxu0 0.0
    %854 = vmatprep.subr.mxu0 0.0
    %855 = vmatpush1.msra.mxu0 0.0
    %856 = vmatprep.subr.mxu0 0.0
    %857 = vmatpush1.msra.mxu0 0.0
    %858 = vmatprep.subr.mxu0 0.0
    %859 = vmatpush1.msra.mxu0 0.0
    %860 = vmatprep.subr.mxu0 0.0
    %861 = vmatpush1.msra.mxu0 0.0
    %862 = vmatprep.subr.mxu0 0.0
    %863 = vmatpush1.msra.mxu0 0.0
    %864 = vmatprep.subr.mxu0 0.0
    %865 = vmatpush1.msra.mxu0 0.0
    %866 = vmatprep.subr.mxu0 0.0
    %867 = vmatpush1.msra.mxu0 0.0
    %868 = vmatprep.subr.mxu0 0.0
    %869 = vmatpush1.msra.mxu0 0.0
    %870 = vmatprep.subr.mxu0 0.0
    %871 = vmatpush1.msra.mxu0 0.0
    %872 = vmatprep.subr.mxu0 0.0
    %873 = vmatpush1.msra.mxu0 0.0
    %874 = vmatprep.subr.mxu0 0.0
    %875 = vmatpush1.msra.mxu0 0.0
    %876 = vmatprep.subr.mxu0 0.0
    %877 = vmatpush1.msra.mxu0 0.0
    %878 = vmatprep.subr.mxu0 0.0
    %879 = vmatpush1.msra.mxu0 0.0
    %880 = vmatprep.subr.mxu0 0.0
    %881 = vmatpush1.msra.mxu0 0.0
    %882 = vmatprep.subr.mxu0 0.0
    %883 = vmatpush1.msra.mxu0 0.0
    %884 = vmatprep.subr.mxu0 0.0
    %885 = vmatpush1.msra.mxu0 0.0
    %886 = vmatprep.subr.mxu0 0.0
    %887 = vmatpush1.msra.mxu0 0.0
    %888 = vmatprep.subr.mxu0 0.0
    %889 = vmatpush1.msra.mxu0 0.0
    %890 = vmatprep.subr.mxu0 0.0
    %891 = vmatpush1.msra.mxu0 0.0
    %892 = vmatprep.subr.mxu0 0.0
    %893 = vmatpush1.msra.mxu0 0.0
    %894 = vmatprep.subr.mxu0 0.0
    %895 = vmatpush1.msra.mxu0 0.0
    %896 = vmatprep.subr.mxu0 0.0
    %897 = vmatpush1.msra.mxu0 0.0
    %898 = vmatprep.subr.mxu0 0.0
    %899 = vmatpush1.msra.mxu0 0.0
    %900 = vmatprep.subr.mxu0 0.0
    %901 = vmatpush1.msra.mxu0 0.0
    %902 = vmatprep.mubr.f32.mxu0 0.0
    %903 = vmatmul.mubr.f32.gmra.mrb[0].mxu0 %v836
    %v904 = vpop.f32.mrb[0].mxu0
    %v905 = vadd.f32 0.0, %v904
    %v906 = vpop.f32.mrb[0].mxu0
    %907 = vdwg.mxu0
    %v909 = vrot.slane %v905, 4
    %v911 = vadd.f32 %v148, %v909
    %v912 = vxor.u32 %v911, 2147483648
    %v913 = vmul.f32 %v912, 1.442695
    %v914 = vpow.pop %v913
    %v915 = vadd.f32 %v914, 1.0
    %v916 = vrcp.pop %v915
    %v917 = vmul.f32 1.0, %v916
    %v918 = vtanh.pop %v911
    %v920 = vrot.slane %v816, 6
    %v922 = vmul.f32 %v917, %v920
    %924 = vrot.lane.b32.xlu0 %v918, 64
    %v925 = vpop.permute.xlu0 %924
    %v927 = vmul.f32 %v917, %v925
    %929 = vrot.lane.b32.xlu0 %v927, 32
    %v930 = vpop.permute.xlu0 %929
    %v932 = vadd.f32 %v922, %v930
    %v933 = vtanh.pop %v932
    %935 = vrot.lane.b32.xlu0 %v933, 64
    %v936 = vpop.permute.xlu0 %935
    %v938 = vmul.f32 %v917, %v936
    %v940 = vrot.slane %v938, 4
    %v942 = vsel %vm249, %v940, 0.0
    %v943 = vrot.slane %v942, 4
    %v944 = vadd.f32 %v942, %v943
    %v945 = vrot.slane %v944, 2
    %v946 = vadd.f32 %v944, %v945
    %v947 = vrot.slane %v946, 1
    %v948 = vadd.f32 %v946, %v947
    %v949 = vmul.f32 %v948, 0.5
    %950 = vrot.lane.b32.xlu0 %v940, 32
    %v951 = vpop.permute.xlu0 %950
    %v952 = vsel %vm69, %v951, 0
    %954 = vmatprep.subr.mxu0 0.0
    %955 = vmatpush1.msra.mxu0 %v32
    %956 = vmatprep.subr.mxu0 0.0
    %957 = vmatpush1.msra.mxu0 %v33
    %958 = vmatprep.subr.mxu0 0.0
    %959 = vmatpush1.msra.mxu0 %v34
    %960 = vmatprep.subr.mxu0 0.0
    %961 = vmatpush1.msra.mxu0 %v35
    %962 = vmatprep.subr.mxu0 0.0
    %963 = vmatpush1.msra.mxu0 0.0
    %964 = vmatprep.subr.mxu0 0.0
    %965 = vmatpush1.msra.mxu0 0.0
    %966 = vmatprep.subr.mxu0 0.0
    %967 = vmatpush1.msra.mxu0 0.0
    %968 = vmatprep.subr.mxu0 0.0
    %969 = vmatpush1.msra.mxu0 0.0
    %970 = vmatprep.subr.mxu0 0.0
    %971 = vmatpush1.msra.mxu0 0.0
    %972 = vmatprep.subr.mxu0 0.0
    %973 = vmatpush1.msra.mxu0 0.0
    %974 = vmatprep.subr.mxu0 0.0
    %975 = vmatpush1.msra.mxu0 0.0
    %976 = vmatprep.subr.mxu0 0.0
    %977 = vmatpush1.msra.mxu0 0.0
    %978 = vmatprep.subr.mxu0 0.0
    %979 = vmatpush1.msra.mxu0 0.0
    %980 = vmatprep.subr.mxu0 0.0
    %981 = vmatpush1.msra.mxu0 0.0
    %982 = vmatprep.subr.mxu0 0.0
    %983 = vmatpush1.msra.mxu0 0.0
    %984 = vmatprep.subr.mxu0 0.0
    %985 = vmatpush1.msra.mxu0 0.0
    %986 = vmatprep.subr.mxu0 0.0
    %987 = vmatpush1.msra.mxu0 0.0
    %988 = vmatprep.subr.mxu0 0.0
    %989 = vmatpush1.msra.mxu0 0.0
    %990 = vmatprep.subr.mxu0 0.0
    %991 = vmatpush1.msra.mxu0 0.0
    %992 = vmatprep.subr.mxu0 0.0
    %993 = vmatpush1.msra.mxu0 0.0
    %994 = vmatprep.subr.mxu0 0.0
    %995 = vmatpush1.msra.mxu0 0.0
    %996 = vmatprep.subr.mxu0 0.0
    %997 = vmatpush1.msra.mxu0 0.0
    %998 = vmatprep.subr.mxu0 0.0
    %999 = vmatpush1.msra.mxu0 0.0
    %1000 = vmatprep.subr.mxu0 0.0
    %1001 = vmatpush1.msra.mxu0 0.0
    %1002 = vmatprep.subr.mxu0 0.0
    %1003 = vmatpush1.msra.mxu0 0.0
    %1004 = vmatprep.subr.mxu0 0.0
    %1005 = vmatpush1.msra.mxu0 0.0
    %1006 = vmatprep.subr.mxu0 0.0
    %1007 = vmatpush1.msra.mxu0 0.0
    %1008 = vmatprep.subr.mxu0 0.0
    %1009 = vmatpush1.msra.mxu0 0.0
    %1010 = vmatprep.subr.mxu0 0.0
    %1011 = vmatpush1.msra.mxu0 0.0
    %1012 = vmatprep.subr.mxu0 0.0
    %1013 = vmatpush1.msra.mxu0 0.0
    %1014 = vmatprep.subr.mxu0 0.0
    %1015 = vmatpush1.msra.mxu0 0.0
    %1016 = vmatprep.subr.mxu0 0.0
    %1017 = vmatpush1.msra.mxu0 0.0
    %1018 = vmatprep.mubr.f32.mxu0 0.0
    %1019 = vmatmul.mubr.f32.gmra.mrb[0].mxu0 %v952
    %v1020 = vpop.f32.mrb[0].mxu0
    %v1021 = vadd.f32 0.0, %v1020
    %v1022 = vpop.f32.mrb[0].mxu0
    %1023 = vdwg.mxu0
    %v1025 = vrot.slane %v1021, 2
    %v1027 = vadd.f32 %v148, %v1025
    %v1028 = vxor.u32 %v1027, 2147483648
    %v1029 = vmul.f32 %v1028, 1.442695
    %v1030 = vpow.pop %v1029
    %v1031 = vadd.f32 %v1030, 1.0
    %v1032 = vrcp.pop %v1031
    %v1033 = vmul.f32 1.0, %v1032
    %v1034 = vtanh.pop %v1027
    %v1036 = vrot.slane %v932, 6
    %v1038 = vmul.f32 %v1033, %v1036
    %1040 = vrot.lane.b32.xlu0 %v1034, 64
    %v1041 = vpop.permute.xlu0 %1040
    %v1043 = vmul.f32 %v1033, %v1041
    %1045 = vrot.lane.b32.xlu0 %v1043, 32
    %v1046 = vpop.permute.xlu0 %1045
    %v1048 = vadd.f32 %v1038, %v1046
    %v1049 = vtanh.pop %v1048
    %1051 = vrot.lane.b32.xlu0 %v1049, 64
    %v1052 = vpop.permute.xlu0 %1051
    %v1054 = vmul.f32 %v1033, %v1052
    %v1056 = vrot.slane %v1054, 6
    %v1058 = vsel %vm249, %v1056, 0.0
    %v1059 = vrot.slane %v1058, 4
    %v1060 = vadd.f32 %v1058, %v1059
    %v1061 = vrot.slane %v1060, 2
    %v1062 = vadd.f32 %v1060, %v1061
    %v1063 = vrot.slane %v1062, 1
    %v1064 = vadd.f32 %v1062, %v1063
    %v1065 = vmul.f32 %v1064, 0.5
    %vm1066 = vcmask 1040384
    %v1067 = vsel %vm1066, %v257, %v374
    %vm1068 = vcmask 1041408
    %v1069 = vsel %vm1068, %v1067, %v490
    %vm1070 = vcmask 1042432
    %v1071 = vsel %vm1070, %v1069, %v606
    %vm1072 = vcmask 1043456
    %v1073 = vsel %vm1072, %v1071, %v716
    %vm1074 = vcmask 1044480
    %v1075 = vsel %vm1074, %v1073, %v833
    %vm1076 = vcmask 1045504
    %v1077 = vsel %vm1076, %v1075, %v949
    %vm1078 = vcmask 1046528
    %v1079 = vsel %vm1078, %v1077, %v1065
    %v1081 = vlaneseq
    %v1082 = vshrl.u32 %v1081, 7
    %v1083 = vsub.s32 0, %v1082
    %v1084 = vrot.slane %v45, %v1083
    %1087 = vrot.lane.b32.xlu0 %v1079, 32
    %v1088 = vpop.permute.xlu0 %1087
    %v1089 = vsel %vm69, %v1088, 0
    %1091 = vmatprep.subr.mxu0 0.0
    %1092 = vmatpush1.msra.mxu0 %v36
    %1093 = vmatprep.subr.mxu0 0.0
    %1094 = vmatpush1.msra.mxu0 %v37
    %1095 = vmatprep.subr.mxu0 0.0
    %1096 = vmatpush1.msra.mxu0 %v38
    %1097 = vmatprep.subr.mxu0 0.0
    %1098 = vmatpush1.msra.mxu0 %v39
    %1099 = vmatprep.subr.mxu0 0.0
    %1100 = vmatpush1.msra.mxu0 0.0
    %1101 = vmatprep.subr.mxu0 0.0
    %1102 = vmatpush1.msra.mxu0 0.0
    %1103 = vmatprep.subr.mxu0 0.0
    %1104 = vmatpush1.msra.mxu0 0.0
    %1105 = vmatprep.subr.mxu0 0.0
    %1106 = vmatpush1.msra.mxu0 0.0
    %1107 = vmatprep.subr.mxu0 0.0
    %1108 = vmatpush1.msra.mxu0 0.0
    %1109 = vmatprep.subr.mxu0 0.0
    %1110 = vmatpush1.msra.mxu0 0.0
    %1111 = vmatprep.subr.mxu0 0.0
    %1112 = vmatpush1.msra.mxu0 0.0
    %1113 = vmatprep.subr.mxu0 0.0
    %1114 = vmatpush1.msra.mxu0 0.0
    %1115 = vmatprep.subr.mxu0 0.0
    %1116 = vmatpush1.msra.mxu0 0.0
    %1117 = vmatprep.subr.mxu0 0.0
    %1118 = vmatpush1.msra.mxu0 0.0
    %1119 = vmatprep.subr.mxu0 0.0
    %1120 = vmatpush1.msra.mxu0 0.0
    %1121 = vmatprep.subr.mxu0 0.0
    %1122 = vmatpush1.msra.mxu0 0.0
    %1123 = vmatprep.subr.mxu0 0.0
    %1124 = vmatpush1.msra.mxu0 0.0
    %1125 = vmatprep.subr.mxu0 0.0
    %1126 = vmatpush1.msra.mxu0 0.0
    %1127 = vmatprep.subr.mxu0 0.0
    %1128 = vmatpush1.msra.mxu0 0.0
    %1129 = vmatprep.subr.mxu0 0.0
    %1130 = vmatpush1.msra.mxu0 0.0
    %1131 = vmatprep.subr.mxu0 0.0
    %1132 = vmatpush1.msra.mxu0 0.0
    %1133 = vmatprep.subr.mxu0 0.0
    %1134 = vmatpush1.msra.mxu0 0.0
    %1135 = vmatprep.subr.mxu0 0.0
    %1136 = vmatpush1.msra.mxu0 0.0
    %1137 = vmatprep.subr.mxu0 0.0
    %1138 = vmatpush1.msra.mxu0 0.0
    %1139 = vmatprep.subr.mxu0 0.0
    %1140 = vmatpush1.msra.mxu0 0.0
    %1141 = vmatprep.subr.mxu0 0.0
    %1142 = vmatpush1.msra.mxu0 0.0
    %1143 = vmatprep.subr.mxu0 0.0
    %1144 = vmatpush1.msra.mxu0 0.0
    %1145 = vmatprep.subr.mxu0 0.0
    %1146 = vmatpush1.msra.mxu0 0.0
    %1147 = vmatprep.subr.mxu0 0.0
    %1148 = vmatpush1.msra.mxu0 0.0
    %1149 = vmatprep.subr.mxu0 0.0
    %1150 = vmatpush1.msra.mxu0 0.0
    %1151 = vmatprep.subr.mxu0 0.0
    %1152 = vmatpush1.msra.mxu0 0.0
    %1153 = vmatprep.subr.mxu0 0.0
    %1154 = vmatpush1.msra.mxu0 0.0
    %1155 = vmatprep.mubr.f32.mxu0 0.0
    %1156 = vmatmul.mubr.f32.gmra.mrb[0].mxu0 %v1089
    %v1157 = vpop.f32.mrb[0].mxu0
    %v1158 = vadd.f32 %v1084, %v1157
    %v1159 = vpop.f32.mrb[0].mxu0
    %1160 = vdwg.mxu0
    %v1161 = vmax.f32 %v1158, 0.0
    %v1163 = vlaneseq
    %v1164 = vshrl.u32 %v1163, 7
    %v1165 = vsub.s32 0, %v1164
    %v1166 = vrot.slane %v46, %v1165
    %v1169 = vsel %vm69, %v1161, 0
    %1171 = vmatprep.subr.mxu0 0.0
    %1172 = vmatpush1.msra.mxu0 %v40
    %1173 = vmatprep.subr.mxu0 0.0
    %1174 = vmatpush1.msra.mxu0 %v41
    %1175 = vmatprep.subr.mxu0 0.0
    %1176 = vmatpush1.msra.mxu0 %v42
    %1177 = vmatprep.subr.mxu0 0.0
    %1178 = vmatpush1.msra.mxu0 %v43
    %1179 = vmatprep.subr.mxu0 0.0
    %1180 = vmatpush1.msra.mxu0 0.0
    %1181 = vmatprep.subr.mxu0 0.0
    %1182 = vmatpush1.msra.mxu0 0.0
    %1183 = vmatprep.subr.mxu0 0.0
    %1184 = vmatpush1.msra.mxu0 0.0
    %1185 = vmatprep.subr.mxu0 0.0
    %1186 = vmatpush1.msra.mxu0 0.0
    %1187 = vmatprep.subr.mxu0 0.0
    %1188 = vmatpush1.msra.mxu0 0.0
    %1189 = vmatprep.subr.mxu0 0.0
    %1190 = vmatpush1.msra.mxu0 0.0
    %1191 = vmatprep.subr.mxu0 0.0
    %1192 = vmatpush1.msra.mxu0 0.0
    %1193 = vmatprep.subr.mxu0 0.0
    %1194 = vmatpush1.msra.mxu0 0.0
    %1195 = vmatprep.subr.mxu0 0.0
    %1196 = vmatpush1.msra.mxu0 0.0
    %1197 = vmatprep.subr.mxu0 0.0
    %1198 = vmatpush1.msra.mxu0 0.0
    %1199 = vmatprep.subr.mxu0 0.0
    %1200 = vmatpush1.msra.mxu0 0.0
    %1201 = vmatprep.subr.mxu0 0.0
    %1202 = vmatpush1.msra.mxu0 0.0
    %1203 = vmatprep.subr.mxu0 0.0
    %1204 = vmatpush1.msra.mxu0 0.0
    %1205 = vmatprep.subr.mxu0 0.0
    %1206 = vmatpush1.msra.mxu0 0.0
    %1207 = vmatprep.subr.mxu0 0.0
    %1208 = vmatpush1.msra.mxu0 0.0
    %1209 = vmatprep.subr.mxu0 0.0
    %1210 = vmatpush1.msra.mxu0 0.0
    %1211 = vmatprep.subr.mxu0 0.0
    %1212 = vmatpush1.msra.mxu0 0.0
    %1213 = vmatprep.subr.mxu0 0.0
    %1214 = vmatpush1.msra.mxu0 0.0
    %1215 = vmatprep.subr.mxu0 0.0
    %1216 = vmatpush1.msra.mxu0 0.0
    %1217 = vmatprep.subr.mxu0 0.0
    %1218 = vmatpush1.msra.mxu0 0.0
    %1219 = vmatprep.subr.mxu0 0.0
    %1220 = vmatpush1.msra.mxu0 0.0
    %1221 = vmatprep.subr.mxu0 0.0
    %1222 = vmatpush1.msra.mxu0 0.0
    %1223 = vmatprep.subr.mxu0 0.0
    %1224 = vmatpush1.msra.mxu0 0.0
    %1225 = vmatprep.subr.mxu0 0.0
    %1226 = vmatpush1.msra.mxu0 0.0
    %1227 = vmatprep.subr.mxu0 0.0
    %1228 = vmatpush1.msra.mxu0 0.0
    %1229 = vmatprep.subr.mxu0 0.0
    %1230 = vmatpush1.msra.mxu0 0.0
    %1231 = vmatprep.subr.mxu0 0.0
    %1232 = vmatpush1.msra.mxu0 0.0
    %1233 = vmatprep.subr.mxu0 0.0
    %1234 = vmatpush1.msra.mxu0 0.0
    %1235 = vmatprep.mubr.f32.mxu0 0.0
    %1236 = vmatmul.mubr.f32.gmra.mrb[0].mxu0 %v1169
    %v1237 = vpop.f32.mrb[0].mxu0
    %v1238 = vadd.f32 %v1166, %v1237
    %v1239 = vpop.f32.mrb[0].mxu0
    %1240 = vdwg.mxu0
    %vm1241 = vcmask 31744
    %1242 = vst.msk [vmem:[%s3] sm:$0xff] %vm1241, %v1238
    // Predicated region
    $region18: #{lstm_dqn_forward.1} parent=1 // pred_check
      _
    $region19: #{lstm_dqn_forward.1} parent=1 // pred_check_branch
      %1244 = sbr.rel (0) target = $region21
    $region20: #{lstm_dqn_forward.1} parent=1 // pred_region
      _
    $region21: #{lstm_dqn_forward.1} parent=1 // pred_fallthru
      _
    // Predicated region
    $region22: #{lstm_dqn_forward.1} parent=1 // pred_check
      _
    $region23: #{lstm_dqn_forward.1} parent=1 // pred_check_branch
      %1246 = sbr.rel (0) target = $region25
    $region24: #{lstm_dqn_forward.1} parent=1 // pred_region
      _
    $region25: #{lstm_dqn_forward.1} parent=1 // pred_fallthru
      _
    %1247 = vsyncpa [#allocation3], 1

</llo_original>
